<compile_context>
chip_gen: v5e
topology: v5e:2x2
jax: 0.10.0
libtpu: 0.0.40
codegen_flags: <defaults>
</compile_context>

<pallas_src>
import functools

import jax
import jax.numpy as jnp
from jax.experimental import pallas as pl
from jax.experimental.pallas import tpu as pltpu


def _autoencoder_kernel(x_ref,
                        w1, b1, w2, b2,           # encoder
                        w3, b3, w4, b4, w5, b5,   # decoder
                        o_ref):
    """Whole forward pass (5 matmuls + biases + ReLUs) on one (batch_tile, D_in) block."""
    h = x_ref[...]                                # (tile_b, D_in), io dtype (f32 or bf16)

    def dense(h, w_ref, b_ref, relu):
        # y = h @ W + b ; W already (in, out); MXU accumulates in f32.
        y = jnp.dot(h.astype(w_ref.dtype), w_ref[...],
                    preferred_element_type=jnp.float32)
        y = y + b_ref[...]                        # (1, out) f32 broadcast over batch rows
        return jnp.maximum(y, 0.0) if relu else y

    # Encoder
    h = dense(h, w1, b1, relu=True)
    h = dense(h, w2, b2, relu=True)
    # Decoder
    h = dense(h, w3, b3, relu=True)
    h = dense(h, w4, b4, relu=True)
    h = dense(h, w5, b5, relu=False)              # output layer: no ReLU

    o_ref[...] = h.astype(o_ref.dtype)            # (tile_b, D_out) contiguous HBM block


def _pick_batch_tile(B, max_tile=4096, min_grid_steps=4):
    """Largest multiple of 128 dividing B, capped at max_tile, preferring >= min_grid_steps
    grid steps (megacore sharding / pipelining).  Fallback: the whole batch."""
    cands = [t for t in range(128, min(B, max_tile) + 1, 128) if B % t == 0]
    if not cands:
        return B
    multi = [t for t in cands if B // t >= min_grid_steps]
    return max(multi) if multi else max(cands)


def autoencoder_forward(x, params, *, batch_tile=None,
                        io_dtype=jnp.float32, out_dtype=None):
    """x: [B, input_dim].
    params: list of (W, b) with W shaped (out, in) (PyTorch layout), b shaped (out,)."""
    B, D_in = x.shape
    D_out = params[-1][0].shape[0]
    if out_dtype is None:
        out_dtype = x.dtype
    if batch_tile is None:
        batch_tile = _pick_batch_tile(B)
    assert B % batch_tile == 0, "batch must be divisible by batch_tile"
    grid = (B // batch_tile,)

    # Pre-cast / pre-transpose in HBM (tiny for weights; x cast only matters for bf16 I/O).
    x_io = x.astype(io_dtype)
    flat_params = []
    in_specs = [pl.BlockSpec((batch_tile, D_in), lambda i: (i, 0))]
    for (w, b) in params:
        wt = jnp.transpose(w).astype(io_dtype)            # (in, out)
        bt = b.reshape(1, -1).astype(jnp.float32)          # (1, out), f32 epilogue
        in_specs.append(pl.BlockSpec(wt.shape, lambda i: (0, 0)))   # VMEM-resident
        in_specs.append(pl.BlockSpec(bt.shape, lambda i: (0, 0)))
        flat_params.extend([wt, bt])

    out_specs = pl.BlockSpec((batch_tile, D_out), lambda i: (i, 0))

    # VMEM budget: double-buffered x/out tiles + resident weights + live activations.
    elt_io = jnp.dtype(io_dtype).itemsize
    elt_out = jnp.dtype(out_dtype).itemsize
    io_bytes = 2 * batch_tile * (D_in * elt_io + D_out * elt_out)
    w_bytes = sum(p.size * p.dtype.itemsize for p in flat_params)
    max_width = max([D_in, D_out] + [w.shape[0] for (w, _) in params])
    act_bytes = 4 * max_width * batch_tile * 4             # chained f32 activations/staging
    vmem_limit = int(min(io_bytes + 2 * w_bytes + act_bytes + (8 << 20), 48 << 20))

    return pl.pallas_call(
        _autoencoder_kernel,
        out_shape=jax.ShapeDtypeStruct((B, D_out), out_dtype),
        grid=grid,
        in_specs=in_specs,
        out_specs=out_specs,
        compiler_params=pltpu.CompilerParams(
            dimension_semantics=("parallel",),
            vmem_limit_bytes=vmem_limit),
    )(x_io, *flat_params)


def make_params(input_dim, encoder_neurons, decoder_neurons, key):
    """Deterministic synthetic parameters matching the PyTorch module's layer shapes.
    W is (out, in) (PyTorch layout), b is (out,)."""
    dims = []
    n_in = input_dim
    for n_out in encoder_neurons:                 # encoder
        dims.append((n_in, n_out))
        n_in = n_out
    dn = decoder_neurons                          # decoder (reverse order, per the module)
    for i in range(len(dn) - 1, -1, -1):
        d_in = dn[i] if i == len(dn) - 1 else dn[i + 1]
        dims.append((d_in, dn[i]))
    dims.append((dn[0], input_dim))               # output layer

    params = []
    for (din, dout) in dims:
        key, kw, kb = jax.random.split(key, 3)
        scale = 1.0 / jnp.sqrt(jnp.float32(din))
        w = jax.random.uniform(kw, (dout, din), jnp.float32, -scale, scale)
        b = jax.random.uniform(kb, (dout,), jnp.float32, -scale, scale)
        params.append((w, b))
    return params


def reference_forward(x, params):
    """Pure-JAX reference of the same forward pass (for a correctness check)."""
    h = x
    n_layers = len(params)
    for idx, (w, b) in enumerate(params):
        h = h @ w.T + b
        if idx < n_layers - 1:                    # all but the final output layer have ReLU
            h = jnp.maximum(h, 0.0)
    return h


if __name__ == "__main__":
    input_dim = 32
    encoder_neurons = [64, 16]
    decoder_neurons = [64, 16]
    batch = 1024          # small test shape; _pick_batch_tile -> tile=256, grid=(4,)

    key = jax.random.PRNGKey(0)
    key, kx = jax.random.split(key)
    x = jax.random.normal(kx, (batch, input_dim), jnp.float32)

    params = make_params(input_dim, encoder_neurons, decoder_neurons, key)
    ref = reference_forward(x, params)

    # f32 I/O + f32 MXU path (exact-ish vs reference).
    fwd = jax.jit(autoencoder_forward)
    out = jax.block_until_ready(fwd(x, params))
    assert out.shape == (batch, input_dim)
    assert jnp.allclose(out, ref, atol=1e-4, rtol=1e-4), "f32 mismatch vs reference"

    # bf16 HBM I/O + bf16 MXU inputs, f32 accumulation / epilogue (looser tolerance).
    fwd_bf16 = jax.jit(functools.partial(autoencoder_forward, io_dtype=jnp.bfloat16))
    out_bf16 = jax.block_until_ready(fwd_bf16(x, params))
    assert out_bf16.shape == (batch, input_dim)
    assert jnp.allclose(out_bf16, ref, atol=1e-1, rtol=1e-1), "bf16 mismatch vs reference"

    print("KERNEL_OK")
</pallas_src>

<mosaic_0001>
module attributes {stable_mosaic.version = 11 : i64} {
  func.func @_autoencoder_kernel(%arg0: i32, %arg1: memref<256x32xf32, #tpu.memory_space<vmem>>, %arg2: memref<32x64xf32, #tpu.memory_space<vmem>>, %arg3: memref<1x64xf32, #tpu.memory_space<vmem>>, %arg4: memref<64x16xf32, #tpu.memory_space<vmem>>, %arg5: memref<1x16xf32, #tpu.memory_space<vmem>>, %arg6: memref<16x16xf32, #tpu.memory_space<vmem>>, %arg7: memref<1x16xf32, #tpu.memory_space<vmem>>, %arg8: memref<16x64xf32, #tpu.memory_space<vmem>>, %arg9: memref<1x64xf32, #tpu.memory_space<vmem>>, %arg10: memref<64x32xf32, #tpu.memory_space<vmem>>, %arg11: memref<1x32xf32, #tpu.memory_space<vmem>>, %arg12: memref<256x32xf32, #tpu.memory_space<vmem>>) attributes {dimension_semantics = [#tpu.dimension_semantics<parallel>], iteration_bounds = array<i64: 4>, scalar_prefetch = 0 : i64, scratch_operands = 0 : i64, tpu.core_type = #tpu.core_type<tc>, window_params = [{transform_indices = @transform_0, window_bounds = array<i64: 256, 32>}, {pipeline_mode = #tpu.pipeline_mode<synchronous>, transform_indices = @transform_1, window_bounds = array<i64: 32, 64>}, {pipeline_mode = #tpu.pipeline_mode<synchronous>, transform_indices = @transform_2, window_bounds = array<i64: 1, 64>}, {pipeline_mode = #tpu.pipeline_mode<synchronous>, transform_indices = @transform_3, window_bounds = array<i64: 64, 16>}, {pipeline_mode = #tpu.pipeline_mode<synchronous>, transform_indices = @transform_4, window_bounds = array<i64: 1, 16>}, {pipeline_mode = #tpu.pipeline_mode<synchronous>, transform_indices = @transform_5, window_bounds = array<i64: 16, 16>}, {pipeline_mode = #tpu.pipeline_mode<synchronous>, transform_indices = @transform_6, window_bounds = array<i64: 1, 16>}, {pipeline_mode = #tpu.pipeline_mode<synchronous>, transform_indices = @transform_7, window_bounds = array<i64: 16, 64>}, {pipeline_mode = #tpu.pipeline_mode<synchronous>, transform_indices = @transform_8, window_bounds = array<i64: 1, 64>}, {pipeline_mode = #tpu.pipeline_mode<synchronous>, transform_indices = @transform_9, window_bounds = array<i64: 64, 32>}, {pipeline_mode = #tpu.pipeline_mode<synchronous>, transform_indices = @transform_10, window_bounds = array<i64: 1, 32>}, {transform_indices = @transform_11, window_bounds = array<i64: 256, 32>}]} {
    %c0 = arith.constant 0 : index
    %c0_0 = arith.constant 0 : index
    %0 = vector.load %arg1[%c0, %c0_0] : memref<256x32xf32, #tpu.memory_space<vmem>>, vector<256x32xf32>
    %c0_1 = arith.constant 0 : index
    %c0_2 = arith.constant 0 : index
    %1 = vector.load %arg2[%c0_1, %c0_2] : memref<32x64xf32, #tpu.memory_space<vmem>>, vector<32x64xf32>
    %cst = arith.constant dense<0.000000e+00> : vector<256x64xf32>
    %2 = tpu.matmul %0, %1, %cst {dimension_numbers = #tpu.dot_dimension_numbers<[1], [0], [0], [1], [0, 0, 1, 1], [], []>} : vector<256x32xf32>, vector<32x64xf32>, vector<256x64xf32> -> vector<256x64xf32>
    %c0_3 = arith.constant 0 : index
    %c0_4 = arith.constant 0 : index
    %3 = vector.load %arg3[%c0_3, %c0_4] : memref<1x64xf32, #tpu.memory_space<vmem>>, vector<1x64xf32>
    %4 = vector.broadcast %3 : vector<1x64xf32> to vector<256x64xf32>
    %5 = arith.addf %2, %4 : vector<256x64xf32>
    %cst_5 = arith.constant 0.000000e+00 : f32
    %6 = vector.broadcast %cst_5 : f32 to vector<256x64xf32>
    %7 = arith.maximumf %5, %6 : vector<256x64xf32>
    %c0_6 = arith.constant 0 : index
    %c0_7 = arith.constant 0 : index
    %8 = vector.load %arg4[%c0_6, %c0_7] : memref<64x16xf32, #tpu.memory_space<vmem>>, vector<64x16xf32>
    %cst_8 = arith.constant dense<0.000000e+00> : vector<256x16xf32>
    %9 = tpu.matmul %7, %8, %cst_8 {dimension_numbers = #tpu.dot_dimension_numbers<[1], [0], [0], [1], [0, 0, 1, 1], [], []>} : vector<256x64xf32>, vector<64x16xf32>, vector<256x16xf32> -> vector<256x16xf32>
    %c0_9 = arith.constant 0 : index
    %c0_10 = arith.constant 0 : index
    %10 = vector.load %arg5[%c0_9, %c0_10] : memref<1x16xf32, #tpu.memory_space<vmem>>, vector<1x16xf32>
    %11 = vector.broadcast %10 : vector<1x16xf32> to vector<256x16xf32>
    %12 = arith.addf %9, %11 : vector<256x16xf32>
    %cst_11 = arith.constant 0.000000e+00 : f32
    %13 = vector.broadcast %cst_11 : f32 to vector<256x16xf32>
    %14 = arith.maximumf %12, %13 : vector<256x16xf32>
    %c0_12 = arith.constant 0 : index
    %c0_13 = arith.constant 0 : index
    %15 = vector.load %arg6[%c0_12, %c0_13] : memref<16x16xf32, #tpu.memory_space<vmem>>, vector<16x16xf32>
    %cst_14 = arith.constant dense<0.000000e+00> : vector<256x16xf32>
    %16 = tpu.matmul %14, %15, %cst_14 {dimension_numbers = #tpu.dot_dimension_numbers<[1], [0], [0], [1], [0, 0, 1, 1], [], []>} : vector<256x16xf32>, vector<16x16xf32>, vector<256x16xf32> -> vector<256x16xf32>
    %c0_15 = arith.constant 0 : index
    %c0_16 = arith.constant 0 : index
    %17 = vector.load %arg7[%c0_15, %c0_16] : memref<1x16xf32, #tpu.memory_space<vmem>>, vector<1x16xf32>
    %18 = vector.broadcast %17 : vector<1x16xf32> to vector<256x16xf32>
    %19 = arith.addf %16, %18 : vector<256x16xf32>
    %cst_17 = arith.constant 0.000000e+00 : f32
    %20 = vector.broadcast %cst_17 : f32 to vector<256x16xf32>
    %21 = arith.maximumf %19, %20 : vector<256x16xf32>
    %c0_18 = arith.constant 0 : index
    %c0_19 = arith.constant 0 : index
    %22 = vector.load %arg8[%c0_18, %c0_19] : memref<16x64xf32, #tpu.memory_space<vmem>>, vector<16x64xf32>
    %cst_20 = arith.constant dense<0.000000e+00> : vector<256x64xf32>
    %23 = tpu.matmul %21, %22, %cst_20 {dimension_numbers = #tpu.dot_dimension_numbers<[1], [0], [0], [1], [0, 0, 1, 1], [], []>} : vector<256x16xf32>, vector<16x64xf32>, vector<256x64xf32> -> vector<256x64xf32>
    %c0_21 = arith.constant 0 : index
    %c0_22 = arith.constant 0 : index
    %24 = vector.load %arg9[%c0_21, %c0_22] : memref<1x64xf32, #tpu.memory_space<vmem>>, vector<1x64xf32>
    %25 = vector.broadcast %24 : vector<1x64xf32> to vector<256x64xf32>
    %26 = arith.addf %23, %25 : vector<256x64xf32>
    %cst_23 = arith.constant 0.000000e+00 : f32
    %27 = vector.broadcast %cst_23 : f32 to vector<256x64xf32>
    %28 = arith.maximumf %26, %27 : vector<256x64xf32>
    %c0_24 = arith.constant 0 : index
    %c0_25 = arith.constant 0 : index
    %29 = vector.load %arg10[%c0_24, %c0_25] : memref<64x32xf32, #tpu.memory_space<vmem>>, vector<64x32xf32>
    %cst_26 = arith.constant dense<0.000000e+00> : vector<256x32xf32>
    %30 = tpu.matmul %28, %29, %cst_26 {dimension_numbers = #tpu.dot_dimension_numbers<[1], [0], [0], [1], [0, 0, 1, 1], [], []>} : vector<256x64xf32>, vector<64x32xf32>, vector<256x32xf32> -> vector<256x32xf32>
    %c0_27 = arith.constant 0 : index
    %c0_28 = arith.constant 0 : index
    %31 = vector.load %arg11[%c0_27, %c0_28] : memref<1x32xf32, #tpu.memory_space<vmem>>, vector<1x32xf32>
    %32 = vector.broadcast %31 : vector<1x32xf32> to vector<256x32xf32>
    %33 = arith.addf %30, %32 : vector<256x32xf32>
    %c0_29 = arith.constant 0 : index
    %c0_30 = arith.constant 0 : index
    %34 = vector.load %arg12[%c0_29, %c0_30] : memref<256x32xf32, #tpu.memory_space<vmem>>, vector<256x32xf32>
    tpu.vector_store %arg12[%c0_29, %c0_30], %33 {strides = array<i32>} : memref<256x32xf32, #tpu.memory_space<vmem>>, vector<256x32xf32>,
    return
  }
  func.func @transform_0(%arg0: i32) -> (i32, i32) {
    %c0_i32 = arith.constant 0 : i32
    %c0_i32_0 = arith.constant 0 : i32
    return %arg0, %c0_i32 : i32, i32
  }
  func.func @transform_1(%arg0: i32) -> (i32, i32) {
    %c0_i32 = arith.constant 0 : i32
    %c0_i32_0 = arith.constant 0 : i32
    %c0_i32_1 = arith.constant 0 : i32
    return %c0_i32, %c0_i32_0 : i32, i32
  }
  func.func @transform_2(%arg0: i32) -> (i32, i32) {
    %c0_i32 = arith.constant 0 : i32
    %c0_i32_0 = arith.constant 0 : i32
    %c0_i32_1 = arith.constant 0 : i32
    return %c0_i32, %c0_i32_0 : i32, i32
  }
  func.func @transform_3(%arg0: i32) -> (i32, i32) {
    %c0_i32 = arith.constant 0 : i32
    %c0_i32_0 = arith.constant 0 : i32
    %c0_i32_1 = arith.constant 0 : i32
    return %c0_i32, %c0_i32_0 : i32, i32
  }
  func.func @transform_4(%arg0: i32) -> (i32, i32) {
    %c0_i32 = arith.constant 0 : i32
    %c0_i32_0 = arith.constant 0 : i32
    %c0_i32_1 = arith.constant 0 : i32
    return %c0_i32, %c0_i32_0 : i32, i32
  }
  func.func @transform_5(%arg0: i32) -> (i32, i32) {
    %c0_i32 = arith.constant 0 : i32
    %c0_i32_0 = arith.constant 0 : i32
    %c0_i32_1 = arith.constant 0 : i32
    return %c0_i32, %c0_i32_0 : i32, i32
  }
  func.func @transform_6(%arg0: i32) -> (i32, i32) {
    %c0_i32 = arith.constant 0 : i32
    %c0_i32_0 = arith.constant 0 : i32
    %c0_i32_1 = arith.constant 0 : i32
    return %c0_i32, %c0_i32_0 : i32, i32
  }
  func.func @transform_7(%arg0: i32) -> (i32, i32) {
    %c0_i32 = arith.constant 0 : i32
    %c0_i32_0 = arith.constant 0 : i32
    %c0_i32_1 = arith.constant 0 : i32
    return %c0_i32, %c0_i32_0 : i32, i32
  }
  func.func @transform_8(%arg0: i32) -> (i32, i32) {
    %c0_i32 = arith.constant 0 : i32
    %c0_i32_0 = arith.constant 0 : i32
    %c0_i32_1 = arith.constant 0 : i32
    return %c0_i32, %c0_i32_0 : i32, i32
  }
  func.func @transform_9(%arg0: i32) -> (i32, i32) {
    %c0_i32 = arith.constant 0 : i32
    %c0_i32_0 = arith.constant 0 : i32
    %c0_i32_1 = arith.constant 0 : i32
    return %c0_i32, %c0_i32_0 : i32, i32
  }
  func.func @transform_10(%arg0: i32) -> (i32, i32) {
    %c0_i32 = arith.constant 0 : i32
    %c0_i32_0 = arith.constant 0 : i32
    %c0_i32_1 = arith.constant 0 : i32
    return %c0_i32, %c0_i32_0 : i32, i32
  }
  func.func @transform_11(%arg0: i32) -> (i32, i32) {
    %c0_i32 = arith.constant 0 : i32
    %c0_i32_0 = arith.constant 0 : i32
    return %arg0, %c0_i32 : i32, i32
  }
}

</mosaic_0001>

<llo_original>
// kernel: autoencoder_forward.1
$region0: #{autoencoder_forward.1}
  #allocation0 [shape = 'u32[]', space=smem, size = 0x4, offset = 0x4, fixed_abs, tag = 'smem constant byte address 0x4 - core index']
  #allocation1 [shape = 'u32[72,128]{1,0:T(1,128)}', space=vmem, size = 0x9000, scoped, tag = 'internal scratch']
  %s0 = inlined_call_operand.vmem [shape: f32[1024,32], index: 0, kind: input, shape index: {}]
  %s1 = inlined_call_operand.vmem [shape: f32[32,64], index: 1, kind: input, shape index: {}]
  %s2 = inlined_call_operand.vmem [shape: f32[1,64], index: 2, kind: input, shape index: {}]
  %s3 = inlined_call_operand.vmem [shape: f32[64,16], index: 3, kind: input, shape index: {}]
  %s4 = inlined_call_operand.vmem [shape: f32[1,16], index: 4, kind: input, shape index: {}]
  %s5 = inlined_call_operand.vmem [shape: f32[16,16], index: 5, kind: input, shape index: {}]
  %s6 = inlined_call_operand.vmem [shape: f32[1,16], index: 6, kind: input, shape index: {}]
  %s7 = inlined_call_operand.vmem [shape: f32[16,64], index: 7, kind: input, shape index: {}]
  %s8 = inlined_call_operand.vmem [shape: f32[1,64], index: 8, kind: input, shape index: {}]
  %s9 = inlined_call_operand.vmem [shape: f32[64,32], index: 9, kind: input, shape index: {}]
  %s10 = inlined_call_operand.vmem [shape: f32[1,32], index: 10, kind: input, shape index: {}]
  %s11 = inlined_call_operand.vmem [shape: f32[1024,32], index: 11, kind: output, shape index: {}]
  %s12 = sld [smem:[#allocation0]]
  $region77: #{autoencoder_forward.1} parent=0
    _
  %s14 = ssub.s32 1, %s12
  %s15 = scalar_select 0, %s14, %s12
  loop: start=0, step=1, limit=6
  $region2: #{autoencoder_forward.1} parent=0 // loop_pre_header
    _
  $region3: #{autoencoder_forward.1} parent=0 // loop_header
    %s17 = sphi 0, %s21
    %p18 = scmp.ge.s32.totalorder %s17, 6
    %s27 = sphi 0, %s29
    %s30 = sphi 0, %s27
    %s31 = sphi 0, %s30
    %s47 = sphi 0, %s31
    %s51 = sphi 0, %s51
    %s53 = sphi 0, %s51
    %s54 = sphi 0, %s53
    %s68 = sphi 0, %s54
    %s72 = sphi 0, %s72
    %s74 = sphi 0, %s72
    %s75 = sphi 0, %s74
    %s89 = sphi 0, %s75
    %s93 = sphi 0, %s93
    %s95 = sphi 0, %s93
    %s96 = sphi 0, %s95
    %s110 = sphi 0, %s96
    %s114 = sphi 0, %s114
    %s116 = sphi 0, %s114
    %s117 = sphi 0, %s116
    %s131 = sphi 0, %s117
    %s135 = sphi 0, %s135
    %s137 = sphi 0, %s135
    %s138 = sphi 0, %s137
    %s152 = sphi 0, %s138
    %s156 = sphi 0, %s156
    %s158 = sphi 0, %s156
    %s159 = sphi 0, %s158
    %s173 = sphi 0, %s159
    %s177 = sphi 0, %s177
    %s179 = sphi 0, %s177
    %s180 = sphi 0, %s179
    %s194 = sphi 0, %s180
    %s198 = sphi 0, %s198
    %s200 = sphi 0, %s198
    %s201 = sphi 0, %s200
    %s215 = sphi 0, %s201
    %s219 = sphi 0, %s219
    %s221 = sphi 0, %s219
    %s222 = sphi 0, %s221
    %s236 = sphi 0, %s222
    %s240 = sphi 0, %s240
    %s242 = sphi 0, %s240
    %s243 = sphi 0, %s242
    %s257 = sphi 0, %s243
    %s263 = sphi 0, %s265
    %s266 = sphi 0, %s263
    %s267 = sphi 0, %s266
    %s283 = sphi 0, %s267
  $region4: #{autoencoder_forward.1} parent=0 // loop_header_branch
    %20 = sbr.rel (%p18) target = $region8
  $region5: #{autoencoder_forward.1} parent=0 // loop_body
    %s22 = ssub.s32 %s17, 1
    %s23 = ssub.s32 %s17, 2
    %s24 = sadd.s32 %s17, 1
    %s25 = ssub.s32 %s17, %s24
    %p26 = scmp.eq.s32.totalorder %s25, 0
    %s28 = sadd.s32 %s27, 1
    %s29 = scalar_select %p26, %s27, %s28
    %p32 = pneg %p26
    %p33 = scmp.eq.s32.totalorder %s17, 3
    %p34 = por %p32, %p33
    %p35 = scmp.ne.s32.totalorder %s27, %s30
    %p36 = scmp.eq.s32.totalorder %s17, 0
    %p37 = por %p35, %p36
    %p38 = scmp.ne.s32.totalorder %s27, %s30
    %p39 = scmp.eq.s32.totalorder %s22, 3
    %p40 = por %p38, %p39
    %p41 = scmp.ne.s32.totalorder %s30, %s31
    %p42 = scmp.eq.s32.totalorder %s22, 0
    %p43 = por %p41, %p42
    %p44 = scmp.ne.s32.totalorder %s30, %s31
    %p45 = scmp.eq.s32.totalorder %s23, 3
    %p46 = por %p44, %p45
    %p48 = scmp.ne.s32.totalorder %s31, %s47
    %p49 = scmp.eq.s32.totalorder %s23, 0
    %p50 = por %p48, %p49
    %s52 = sadd.s32 %s51, 1
    %p55 = scmp.eq.s32.totalorder %s17, 3
    %p56 = scmp.ne.s32.totalorder %s51, %s53
    %p57 = scmp.eq.s32.totalorder %s17, 0
    %p58 = por %p56, %p57
    %p59 = scmp.ne.s32.totalorder %s51, %s53
    %p60 = scmp.eq.s32.totalorder %s22, 3
    %p61 = por %p59, %p60
    %p62 = scmp.ne.s32.totalorder %s53, %s54
    %p63 = scmp.eq.s32.totalorder %s22, 0
    %p64 = por %p62, %p63
    %p65 = scmp.ne.s32.totalorder %s53, %s54
    %p66 = scmp.eq.s32.totalorder %s23, 3
    %p67 = por %p65, %p66
    %p69 = scmp.ne.s32.totalorder %s54, %s68
    %p70 = scmp.eq.s32.totalorder %s23, 0
    %p71 = por %p69, %p70
    %s73 = sadd.s32 %s72, 1
    %p76 = scmp.eq.s32.totalorder %s17, 3
    %p77 = scmp.ne.s32.totalorder %s72, %s74
    %p78 = scmp.eq.s32.totalorder %s17, 0
    %p79 = por %p77, %p78
    %p80 = scmp.ne.s32.totalorder %s72, %s74
    %p81 = scmp.eq.s32.totalorder %s22, 3
    %p82 = por %p80, %p81
    %p83 = scmp.ne.s32.totalorder %s74, %s75
    %p84 = scmp.eq.s32.totalorder %s22, 0
    %p85 = por %p83, %p84
    %p86 = scmp.ne.s32.totalorder %s74, %s75
    %p87 = scmp.eq.s32.totalorder %s23, 3
    %p88 = por %p86, %p87
    %p90 = scmp.ne.s32.totalorder %s75, %s89
    %p91 = scmp.eq.s32.totalorder %s23, 0
    %p92 = por %p90, %p91
    %s94 = sadd.s32 %s93, 1
    %p97 = scmp.eq.s32.totalorder %s17, 3
    %p98 = scmp.ne.s32.totalorder %s93, %s95
    %p99 = scmp.eq.s32.totalorder %s17, 0
    %p100 = por %p98, %p99
    %p101 = scmp.ne.s32.totalorder %s93, %s95
    %p102 = scmp.eq.s32.totalorder %s22, 3
    %p103 = por %p101, %p102
    %p104 = scmp.ne.s32.totalorder %s95, %s96
    %p105 = scmp.eq.s32.totalorder %s22, 0
    %p106 = por %p104, %p105
    %p107 = scmp.ne.s32.totalorder %s95, %s96
    %p108 = scmp.eq.s32.totalorder %s23, 3
    %p109 = por %p107, %p108
    %p111 = scmp.ne.s32.totalorder %s96, %s110
    %p112 = scmp.eq.s32.totalorder %s23, 0
    %p113 = por %p111, %p112
    %s115 = sadd.s32 %s114, 1
    %p118 = scmp.eq.s32.totalorder %s17, 3
    %p119 = scmp.ne.s32.totalorder %s114, %s116
    %p120 = scmp.eq.s32.totalorder %s17, 0
    %p121 = por %p119, %p120
    %p122 = scmp.ne.s32.totalorder %s114, %s116
    %p123 = scmp.eq.s32.totalorder %s22, 3
    %p124 = por %p122, %p123
    %p125 = scmp.ne.s32.totalorder %s116, %s117
    %p126 = scmp.eq.s32.totalorder %s22, 0
    %p127 = por %p125, %p126
    %p128 = scmp.ne.s32.totalorder %s116, %s117
    %p129 = scmp.eq.s32.totalorder %s23, 3
    %p130 = por %p128, %p129
    %p132 = scmp.ne.s32.totalorder %s117, %s131
    %p133 = scmp.eq.s32.totalorder %s23, 0
    %p134 = por %p132, %p133
    %s136 = sadd.s32 %s135, 1
    %p139 = scmp.eq.s32.totalorder %s17, 3
    %p140 = scmp.ne.s32.totalorder %s135, %s137
    %p141 = scmp.eq.s32.totalorder %s17, 0
    %p142 = por %p140, %p141
    %p143 = scmp.ne.s32.totalorder %s135, %s137
    %p144 = scmp.eq.s32.totalorder %s22, 3
    %p145 = por %p143, %p144
    %p146 = scmp.ne.s32.totalorder %s137, %s138
    %p147 = scmp.eq.s32.totalorder %s22, 0
    %p148 = por %p146, %p147
    %p149 = scmp.ne.s32.totalorder %s137, %s138
    %p150 = scmp.eq.s32.totalorder %s23, 3
    %p151 = por %p149, %p150
    %p153 = scmp.ne.s32.totalorder %s138, %s152
    %p154 = scmp.eq.s32.totalorder %s23, 0
    %p155 = por %p153, %p154
    %s157 = sadd.s32 %s156, 1
    %p160 = scmp.eq.s32.totalorder %s17, 3
    %p161 = scmp.ne.s32.totalorder %s156, %s158
    %p162 = scmp.eq.s32.totalorder %s17, 0
    %p163 = por %p161, %p162
    %p164 = scmp.ne.s32.totalorder %s156, %s158
    %p165 = scmp.eq.s32.totalorder %s22, 3
    %p166 = por %p164, %p165
    %p167 = scmp.ne.s32.totalorder %s158, %s159
    %p168 = scmp.eq.s32.totalorder %s22, 0
    %p169 = por %p167, %p168
    %p170 = scmp.ne.s32.totalorder %s158, %s159
    %p171 = scmp.eq.s32.totalorder %s23, 3
    %p172 = por %p170, %p171
    %p174 = scmp.ne.s32.totalorder %s159, %s173
    %p175 = scmp.eq.s32.totalorder %s23, 0
    %p176 = por %p174, %p175
    %s178 = sadd.s32 %s177, 1
    %p181 = scmp.eq.s32.totalorder %s17, 3
    %p182 = scmp.ne.s32.totalorder %s177, %s179
    %p183 = scmp.eq.s32.totalorder %s17, 0
    %p184 = por %p182, %p183
    %p185 = scmp.ne.s32.totalorder %s177, %s179
    %p186 = scmp.eq.s32.totalorder %s22, 3
    %p187 = por %p185, %p186
    %p188 = scmp.ne.s32.totalorder %s179, %s180
    %p189 = scmp.eq.s32.totalorder %s22, 0
    %p190 = por %p188, %p189
    %p191 = scmp.ne.s32.totalorder %s179, %s180
    %p192 = scmp.eq.s32.totalorder %s23, 3
    %p193 = por %p191, %p192
    %p195 = scmp.ne.s32.totalorder %s180, %s194
    %p196 = scmp.eq.s32.totalorder %s23, 0
    %p197 = por %p195, %p196
    %s199 = sadd.s32 %s198, 1
    %p202 = scmp.eq.s32.totalorder %s17, 3
    %p203 = scmp.ne.s32.totalorder %s198, %s200
    %p204 = scmp.eq.s32.totalorder %s17, 0
    %p205 = por %p203, %p204
    %p206 = scmp.ne.s32.totalorder %s198, %s200
    %p207 = scmp.eq.s32.totalorder %s22, 3
    %p208 = por %p206, %p207
    %p209 = scmp.ne.s32.totalorder %s200, %s201
    %p210 = scmp.eq.s32.totalorder %s22, 0
    %p211 = por %p209, %p210
    %p212 = scmp.ne.s32.totalorder %s200, %s201
    %p213 = scmp.eq.s32.totalorder %s23, 3
    %p214 = por %p212, %p213
    %p216 = scmp.ne.s32.totalorder %s201, %s215
    %p217 = scmp.eq.s32.totalorder %s23, 0
    %p218 = por %p216, %p217
    %s220 = sadd.s32 %s219, 1
    %p223 = scmp.eq.s32.totalorder %s17, 3
    %p224 = scmp.ne.s32.totalorder %s219, %s221
    %p225 = scmp.eq.s32.totalorder %s17, 0
    %p226 = por %p224, %p225
    %p227 = scmp.ne.s32.totalorder %s219, %s221
    %p228 = scmp.eq.s32.totalorder %s22, 3
    %p229 = por %p227, %p228
    %p230 = scmp.ne.s32.totalorder %s221, %s222
    %p231 = scmp.eq.s32.totalorder %s22, 0
    %p232 = por %p230, %p231
    %p233 = scmp.ne.s32.totalorder %s221, %s222
    %p234 = scmp.eq.s32.totalorder %s23, 3
    %p235 = por %p233, %p234
    %p237 = scmp.ne.s32.totalorder %s222, %s236
    %p238 = scmp.eq.s32.totalorder %s23, 0
    %p239 = por %p237, %p238
    %s241 = sadd.s32 %s240, 1
    %p244 = scmp.eq.s32.totalorder %s17, 3
    %p245 = scmp.ne.s32.totalorder %s240, %s242
    %p246 = scmp.eq.s32.totalorder %s17, 0
    %p247 = por %p245, %p246
    %p248 = scmp.ne.s32.totalorder %s240, %s242
    %p249 = scmp.eq.s32.totalorder %s22, 3
    %p250 = por %p248, %p249
    %p251 = scmp.ne.s32.totalorder %s242, %s243
    %p252 = scmp.eq.s32.totalorder %s22, 0
    %p253 = por %p251, %p252
    %p254 = scmp.ne.s32.totalorder %s242, %s243
    %p255 = scmp.eq.s32.totalorder %s23, 3
    %p256 = por %p254, %p255
    %p258 = scmp.ne.s32.totalorder %s243, %s257
    %p259 = scmp.eq.s32.totalorder %s23, 0
    %p260 = por %p258, %p259
    %s261 = ssub.s32 %s17, %s24
    %p262 = scmp.eq.s32.totalorder %s261, 0
    %s264 = sadd.s32 %s263, 1
    %s265 = scalar_select %p262, %s263, %s264
    %p268 = pneg %p262
    %p269 = scmp.eq.s32.totalorder %s17, 3
    %p270 = por %p268, %p269
    %p271 = scmp.ne.s32.totalorder %s263, %s266
    %p272 = scmp.eq.s32.totalorder %s17, 0
    %p273 = por %p271, %p272
    %p274 = scmp.ne.s32.totalorder %s263, %s266
    %p275 = scmp.eq.s32.totalorder %s22, 3
    %p276 = por %p274, %p275
    %p277 = scmp.ne.s32.totalorder %s266, %s267
    %p278 = scmp.eq.s32.totalorder %s22, 0
    %p279 = por %p277, %p278
    %p280 = scmp.ne.s32.totalorder %s266, %s267
    %p281 = scmp.eq.s32.totalorder %s23, 3
    %p282 = por %p280, %p281
    %p284 = scmp.ne.s32.totalorder %s267, %s283
    %p285 = scmp.eq.s32.totalorder %s23, 0
    %p286 = por %p284, %p285
    %p287 = scmp.le.s32.totalorder 1, %s17
    %p288 = scmp.lt.s32.totalorder %s17, 5
    %p289 = pnand %p287, %p288
    %p290 = pneg %p289
    // Predicated region
    $region9: #{autoencoder_forward.1} parent=5 // pred_check
      _
    $region10: #{autoencoder_forward.1} parent=5 // pred_check_branch
      %292 = sbr.rel (%p289) target = $region12
    $region11: #{autoencoder_forward.1} parent=5 // pred_region
      %s293 = ssub.s32 %s17, 1
      // Predicated region
      $region13: #{autoencoder_forward.1} parent=11 // pred_check
        %p294 = pneg %p64
      $region14: #{autoencoder_forward.1} parent=11 // pred_check_branch
        %296 = sbr.rel (%p294) target = $region16
      $region15: #{autoencoder_forward.1} parent=11 // pred_region
        _
      $region16: #{autoencoder_forward.1} parent=11 // pred_fallthru
        _
      // Predicated region
      $region17: #{autoencoder_forward.1} parent=11 // pred_check
        %p297 = pneg %p85
      $region18: #{autoencoder_forward.1} parent=11 // pred_check_branch
        %299 = sbr.rel (%p297) target = $region20
      $region19: #{autoencoder_forward.1} parent=11 // pred_region
        _
      $region20: #{autoencoder_forward.1} parent=11 // pred_fallthru
        _
      // Predicated region
      $region21: #{autoencoder_forward.1} parent=11 // pred_check
        %p300 = pneg %p106
      $region22: #{autoencoder_forward.1} parent=11 // pred_check_branch
        %302 = sbr.rel (%p300) target = $region24
      $region23: #{autoencoder_forward.1} parent=11 // pred_region
        _
      $region24: #{autoencoder_forward.1} parent=11 // pred_fallthru
        _
      // Predicated region
      $region25: #{autoencoder_forward.1} parent=11 // pred_check
        %p303 = pneg %p127
      $region26: #{autoencoder_forward.1} parent=11 // pred_check_branch
        %305 = sbr.rel (%p303) target = $region28
      $region27: #{autoencoder_forward.1} parent=11 // pred_region
        _
      $region28: #{autoencoder_forward.1} parent=11 // pred_fallthru
        _
      // Predicated region
      $region29: #{autoencoder_forward.1} parent=11 // pred_check
        %p306 = pneg %p148
      $region30: #{autoencoder_forward.1} parent=11 // pred_check_branch
        %308 = sbr.rel (%p306) target = $region32
      $region31: #{autoencoder_forward.1} parent=11 // pred_region
        _
      $region32: #{autoencoder_forward.1} parent=11 // pred_fallthru
        _
      // Predicated region
      $region33: #{autoencoder_forward.1} parent=11 // pred_check
        %p309 = pneg %p169
      $region34: #{autoencoder_forward.1} parent=11 // pred_check_branch
        %311 = sbr.rel (%p309) target = $region36
      $region35: #{autoencoder_forward.1} parent=11 // pred_region
        _
      $region36: #{autoencoder_forward.1} parent=11 // pred_fallthru
        _
      // Predicated region
      $region37: #{autoencoder_forward.1} parent=11 // pred_check
        %p312 = pneg %p190
      $region38: #{autoencoder_forward.1} parent=11 // pred_check_branch
        %314 = sbr.rel (%p312) target = $region40
      $region39: #{autoencoder_forward.1} parent=11 // pred_region
        _
      $region40: #{autoencoder_forward.1} parent=11 // pred_fallthru
        _
      // Predicated region
      $region41: #{autoencoder_forward.1} parent=11 // pred_check
        %p315 = pneg %p211
      $region42: #{autoencoder_forward.1} parent=11 // pred_check_branch
        %317 = sbr.rel (%p315) target = $region44
      $region43: #{autoencoder_forward.1} parent=11 // pred_region
        _
      $region44: #{autoencoder_forward.1} parent=11 // pred_fallthru
        _
      // Predicated region
      $region45: #{autoencoder_forward.1} parent=11 // pred_check
        %p318 = pneg %p232
      $region46: #{autoencoder_forward.1} parent=11 // pred_check_branch
        %320 = sbr.rel (%p318) target = $region48
      $region47: #{autoencoder_forward.1} parent=11 // pred_region
        _
      $region48: #{autoencoder_forward.1} parent=11 // pred_fallthru
        _
      // Predicated region
      $region49: #{autoencoder_forward.1} parent=11 // pred_check
        %p321 = pneg %p253
      $region50: #{autoencoder_forward.1} parent=11 // pred_check_branch
        %323 = sbr.rel (%p321) target = $region52
      $region51: #{autoencoder_forward.1} parent=11 // pred_region
        _
      $region52: #{autoencoder_forward.1} parent=11 // pred_fallthru
        _
    $region12: #{autoencoder_forward.1} parent=5 // pred_fallthru
      _
    %p324 = scmp.lt.s32.totalorder %s17, 4
    // Predicated region
    $region53: #{autoencoder_forward.1} parent=5 // pred_check
      %p325 = pneg %p324
    $region54: #{autoencoder_forward.1} parent=5 // pred_check_branch
      %327 = sbr.rel (%p325) target = $region56
    $region55: #{autoencoder_forward.1} parent=5 // pred_region
      // Predicated region
      $region57: #{autoencoder_forward.1} parent=55 // pred_check
        %p328 = pneg %p37
      $region58: #{autoencoder_forward.1} parent=55 // pred_check_branch
        %330 = sbr.rel (%p328) target = $region60
      $region59: #{autoencoder_forward.1} parent=55 // pred_region
        %s331 = smul.u32 32, %s17
        %p332 = scmp.lt.s32.totalorder %s331, 127
        %s333 = scalar_select %p332, %s331, 127
        %s334 = smul.addr %s333, 8
        %s335 = scalar_lea.vmem %s0, %s334
        %s336 = smul.u32 32, %s17
      $region60: #{autoencoder_forward.1} parent=55 // pred_fallthru
        _
    $region56: #{autoencoder_forward.1} parent=5 // pred_fallthru
      _
    %p337 = scmp.le.s32.totalorder 1, %s17
    %p338 = scmp.lt.s32.totalorder %s17, 5
    %p339 = pnand %p337, %p338
    %p340 = pneg %p339
    // Predicated region
    $region61: #{autoencoder_forward.1} parent=5 // pred_check
      _
    $region62: #{autoencoder_forward.1} parent=5 // pred_check_branch
      %342 = sbr.rel (%p339) target = $region64
    $region63: #{autoencoder_forward.1} parent=5 // pred_region
      %s343 = ssub.s32 %s17, 1
      %s344 = smul.u32 32, %s22
      %p345 = scmp.lt.s32.totalorder %s344, 127
      %s346 = scalar_select %p345, %s344, 127
      %s347 = smul.addr %s346, 8
      %s348 = scalar_lea.vmem %s0, %s347
      %p349 = pneg %p43
      %p350 = pneg %p40
      %p351 = pneg %p64
      %p352 = pneg %p61
      %p353 = pneg %p85
      %p354 = pneg %p82
      %p355 = pneg %p106
      %p356 = pneg %p103
      %p357 = pneg %p127
      %p358 = pneg %p124
      %p359 = pneg %p148
      %p360 = pneg %p145
      %p361 = pneg %p169
      %p362 = pneg %p166
      %p363 = pneg %p190
      %p364 = pneg %p187
      %p365 = pneg %p211
      %p366 = pneg %p208
      %p367 = pneg %p232
      %p368 = pneg %p229
      %p369 = pneg %p253
      %p370 = pneg %p250
      %p371 = pneg %p279
      %p372 = pneg %p276
      %s373 = smul.u32 32, %s22
      %p374 = scmp.lt.s32.totalorder %s373, 127
      %s375 = scalar_select %p374, %s373, 127
      %s376 = smul.addr %s375, 8
      %s377 = scalar_lea.vmem %s11, %s376
      %s378 = smul.u32 32, %s22
      %p379 = scmp.lt.s32.totalorder %s378, 127
      %s380 = scalar_select %p379, %s378, 127
      %s381 = smul.addr %s380, 8
      %s382 = scalar_lea.vmem %s0, %s381
      %s383 = smul.u32 32, %s22
      %s384 = smul.u32 32, %s22
      %p385 = scmp.lt.s32.totalorder %s384, 127
      %s386 = scalar_select %p385, %s384, 127
      %s387 = smul.addr %s386, 8
      %s388 = scalar_lea.vmem %s11, %s387
      %s389 = smul.u32 32, %s22
      %v390 = vld [vmem:[%s382] sm:$0xff]
      %v391 = vld [vmem:[%s382 + $0x8] sm:$0xff]
      %v392 = vld [vmem:[%s382 + $0x10] sm:$0xff]
      %v393 = vld [vmem:[%s382 + $0x18] sm:$0xff]
      %v394 = vld [vmem:[%s382 + $0x20] sm:$0xff]
      %v395 = vld [vmem:[%s382 + $0x28] sm:$0xff]
      %v396 = vld [vmem:[%s382 + $0x30] sm:$0xff]
      %v397 = vld [vmem:[%s382 + $0x38] sm:$0xff]
      %v398 = vld [vmem:[%s382 + $0x40] sm:$0xff]
      %v399 = vld [vmem:[%s382 + $0x48] sm:$0xff]
      %v400 = vld [vmem:[%s382 + $0x50] sm:$0xff]
      %v401 = vld [vmem:[%s382 + $0x58] sm:$0xff]
      %v402 = vld [vmem:[%s382 + $0x60] sm:$0xff]
      %v403 = vld [vmem:[%s382 + $0x68] sm:$0xff]
      %v404 = vld [vmem:[%s382 + $0x70] sm:$0xff]
      %v405 = vld [vmem:[%s382 + $0x78] sm:$0xff]
      %v406 = vld [vmem:[%s382 + $0x80] sm:$0xff]
      %v407 = vld [vmem:[%s382 + $0x88] sm:$0xff]
      %v408 = vld [vmem:[%s382 + $0x90] sm:$0xff]
      %v409 = vld [vmem:[%s382 + $0x98] sm:$0xff]
      %v410 = vld [vmem:[%s382 + $0xa0] sm:$0xff]
      %v411 = vld [vmem:[%s382 + $0xa8] sm:$0xff]
      %v412 = vld [vmem:[%s382 + $0xb0] sm:$0xff]
      %v413 = vld [vmem:[%s382 + $0xb8] sm:$0xff]
      %v414 = vld [vmem:[%s382 + $0xc0] sm:$0xff]
      %v415 = vld [vmem:[%s382 + $0xc8] sm:$0xff]
      %v416 = vld [vmem:[%s382 + $0xd0] sm:$0xff]
      %v417 = vld [vmem:[%s382 + $0xd8] sm:$0xff]
      %v418 = vld [vmem:[%s382 + $0xe0] sm:$0xff]
      %v419 = vld [vmem:[%s382 + $0xe8] sm:$0xff]
      %v420 = vld [vmem:[%s382 + $0xf0] sm:$0xff]
      %v421 = vld [vmem:[%s382 + $0xf8] sm:$0xff]
      %v422 = vld [vmem:[%s1] sm:$0xff]
      %v423 = vld [vmem:[%s1 + $0x8] sm:$0xff]
      %v424 = vld [vmem:[%s1 + $0x10] sm:$0xff]
      %v425 = vld [vmem:[%s1 + $0x18] sm:$0xff]
      %v426 = vld [vmem:[%s2] sm:$0x1]
      %v428 = vperm.slane %v426, 0
      %vm430 = vcmask 261120
      %v432 = vsel %vm430, %v390, 0
      %v435 = vsel %vm430, %v391, 0
      %v438 = vsel %vm430, %v392, 0
      %v441 = vsel %vm430, %v393, 0
      %v444 = vsel %vm430, %v394, 0
      %v447 = vsel %vm430, %v395, 0
      %v450 = vsel %vm430, %v396, 0
      %v453 = vsel %vm430, %v397, 0
      %v456 = vsel %vm430, %v398, 0
      %v459 = vsel %vm430, %v399, 0
      %v462 = vsel %vm430, %v400, 0
      %v465 = vsel %vm430, %v401, 0
      %v468 = vsel %vm430, %v402, 0
      %v471 = vsel %vm430, %v403, 0
      %v474 = vsel %vm430, %v404, 0
      %v477 = vsel %vm430, %v405, 0
      %v480 = vsel %vm430, %v406, 0
      %v483 = vsel %vm430, %v407, 0
      %v486 = vsel %vm430, %v408, 0
      %v489 = vsel %vm430, %v409, 0
      %v492 = vsel %vm430, %v410, 0
      %v495 = vsel %vm430, %v411, 0
      %v498 = vsel %vm430, %v412, 0
      %v501 = vsel %vm430, %v413, 0
      %v504 = vsel %vm430, %v414, 0
      %v507 = vsel %vm430, %v415, 0
      %v510 = vsel %vm430, %v416, 0
      %v513 = vsel %vm430, %v417, 0
      %v516 = vsel %vm430, %v418, 0
      %v519 = vsel %vm430, %v419, 0
      %v522 = vsel %vm430, %v420, 0
      %v525 = vsel %vm430, %v421, 0
      %527 = vmatpush.msra.mxu0 0.0
      %528 = vmatpush.msra.mxu0 0.0
      %529 = vmatpush.msra.mxu0 0.0
      %530 = vmatpush.msra.mxu0 0.0
      %531 = vmatpush.msra.mxu0 0.0
      %532 = vmatpush.msra.mxu0 0.0
      %533 = vmatpush.msra.mxu0 0.0
      %534 = vmatpush.msra.mxu0 0.0
      %535 = vmatpush.msra.mxu0 0.0
      %536 = vmatpush.msra.mxu0 0.0
      %537 = vmatpush.msra.mxu0 0.0
      %538 = vmatpush.msra.mxu0 0.0
      %539 = vmatpush.msra.mxu0 %v425
      %540 = vmatpush.msra.mxu0 %v424
      %541 = vmatpush.msra.mxu0 %v423
      %542 = vmatpush.msra.mxu0 %v422
      %543 = vmatmul.f32.gmra.mxu0 %v432
      %v544 = vpop.f32.mrf.mxu0
      %v545 = vadd.f32 %v428, %v544
      %546 = vmatmul.f32.gmra.mxu0 %v435
      %v547 = vpop.f32.mrf.mxu0
      %v548 = vadd.f32 %v428, %v547
      %549 = vmatmul.f32.gmra.mxu0 %v438
      %v550 = vpop.f32.mrf.mxu0
      %v551 = vadd.f32 %v428, %v550
      %552 = vmatmul.f32.gmra.mxu0 %v441
      %v553 = vpop.f32.mrf.mxu0
      %v554 = vadd.f32 %v428, %v553
      %555 = vmatmul.f32.gmra.mxu0 %v444
      %v556 = vpop.f32.mrf.mxu0
      %v557 = vadd.f32 %v428, %v556
      %558 = vmatmul.f32.gmra.mxu0 %v447
      %v559 = vpop.f32.mrf.mxu0
      %v560 = vadd.f32 %v428, %v559
      %561 = vmatmul.f32.gmra.mxu0 %v450
      %v562 = vpop.f32.mrf.mxu0
      %v563 = vadd.f32 %v428, %v562
      %564 = vmatmul.f32.gmra.mxu0 %v453
      %v565 = vpop.f32.mrf.mxu0
      %v566 = vadd.f32 %v428, %v565
      %567 = vmatmul.f32.gmra.mxu0 %v456
      %v568 = vpop.f32.mrf.mxu0
      %v569 = vadd.f32 %v428, %v568
      %570 = vmatmul.f32.gmra.mxu0 %v459
      %v571 = vpop.f32.mrf.mxu0
      %v572 = vadd.f32 %v428, %v571
      %573 = vmatmul.f32.gmra.mxu0 %v462
      %v574 = vpop.f32.mrf.mxu0
      %v575 = vadd.f32 %v428, %v574
      %576 = vmatmul.f32.gmra.mxu0 %v465
      %v577 = vpop.f32.mrf.mxu0
      %v578 = vadd.f32 %v428, %v577
      %579 = vmatmul.f32.gmra.mxu0 %v468
      %v580 = vpop.f32.mrf.mxu0
      %v581 = vadd.f32 %v428, %v580
      %582 = vmatmul.f32.gmra.mxu0 %v471
      %v583 = vpop.f32.mrf.mxu0
      %v584 = vadd.f32 %v428, %v583
      %585 = vmatmul.f32.gmra.mxu0 %v474
      %v586 = vpop.f32.mrf.mxu0
      %v587 = vadd.f32 %v428, %v586
      %588 = vmatmul.f32.gmra.mxu0 %v477
      %v589 = vpop.f32.mrf.mxu0
      %v590 = vadd.f32 %v428, %v589
      %591 = vmatmul.f32.gmra.mxu0 %v480
      %v592 = vpop.f32.mrf.mxu0
      %v593 = vadd.f32 %v428, %v592
      %594 = vmatmul.f32.gmra.mxu0 %v483
      %v595 = vpop.f32.mrf.mxu0
      %v596 = vadd.f32 %v428, %v595
      %597 = vmatmul.f32.gmra.mxu0 %v486
      %v598 = vpop.f32.mrf.mxu0
      %v599 = vadd.f32 %v428, %v598
      %600 = vmatmul.f32.gmra.mxu0 %v489
      %v601 = vpop.f32.mrf.mxu0
      %v602 = vadd.f32 %v428, %v601
      %603 = vmatmul.f32.gmra.mxu0 %v492
      %v604 = vpop.f32.mrf.mxu0
      %v605 = vadd.f32 %v428, %v604
      %606 = vmatmul.f32.gmra.mxu0 %v495
      %v607 = vpop.f32.mrf.mxu0
      %v608 = vadd.f32 %v428, %v607
      %609 = vmatmul.f32.gmra.mxu0 %v498
      %v610 = vpop.f32.mrf.mxu0
      %v611 = vadd.f32 %v428, %v610
      %612 = vmatmul.f32.gmra.mxu0 %v501
      %v613 = vpop.f32.mrf.mxu0
      %v614 = vadd.f32 %v428, %v613
      %615 = vmatmul.f32.gmra.mxu0 %v504
      %v616 = vpop.f32.mrf.mxu0
      %v617 = vadd.f32 %v428, %v616
      %618 = vmatmul.f32.gmra.mxu0 %v507
      %v619 = vpop.f32.mrf.mxu0
      %v620 = vadd.f32 %v428, %v619
      %621 = vmatmul.f32.gmra.mxu0 %v510
      %v622 = vpop.f32.mrf.mxu0
      %v623 = vadd.f32 %v428, %v622
      %624 = vmatmul.f32.gmra.mxu0 %v513
      %v625 = vpop.f32.mrf.mxu0
      %v626 = vadd.f32 %v428, %v625
      %627 = vmatmul.f32.gmra.mxu0 %v516
      %v628 = vpop.f32.mrf.mxu0
      %v629 = vadd.f32 %v428, %v628
      %630 = vmatmul.f32.gmra.mxu0 %v519
      %v631 = vpop.f32.mrf.mxu0
      %v632 = vadd.f32 %v428, %v631
      %633 = vmatmul.f32.gmra.mxu0 %v522
      %v634 = vpop.f32.mrf.mxu0
      %v635 = vadd.f32 %v428, %v634
      %636 = vmatmul.f32.gmra.mxu0 %v525
      %v637 = vpop.f32.mrf.mxu0
      %v638 = vadd.f32 %v428, %v637
      %639 = vdwg.mxu0
      %v640 = vmax.f32 %v545, 0.0
      %v641 = vmax.f32 %v548, 0.0
      %v642 = vmax.f32 %v551, 0.0
      %v643 = vmax.f32 %v554, 0.0
      %v644 = vmax.f32 %v557, 0.0
      %v645 = vmax.f32 %v560, 0.0
      %v646 = vmax.f32 %v563, 0.0
      %v647 = vmax.f32 %v566, 0.0
      %v648 = vmax.f32 %v569, 0.0
      %v649 = vmax.f32 %v572, 0.0
      %v650 = vmax.f32 %v575, 0.0
      %v651 = vmax.f32 %v578, 0.0
      %v652 = vmax.f32 %v581, 0.0
      %v653 = vmax.f32 %v584, 0.0
      %v654 = vmax.f32 %v587, 0.0
      %v655 = vmax.f32 %v590, 0.0
      %v656 = vmax.f32 %v593, 0.0
      %v657 = vmax.f32 %v596, 0.0
      %v658 = vmax.f32 %v599, 0.0
      %v659 = vmax.f32 %v602, 0.0
      %v660 = vmax.f32 %v605, 0.0
      %v661 = vmax.f32 %v608, 0.0
      %v662 = vmax.f32 %v611, 0.0
      %v663 = vmax.f32 %v614, 0.0
      %v664 = vmax.f32 %v617, 0.0
      %v665 = vmax.f32 %v620, 0.0
      %v666 = vmax.f32 %v623, 0.0
      %v667 = vmax.f32 %v626, 0.0
      %v668 = vmax.f32 %v629, 0.0
      %v669 = vmax.f32 %v632, 0.0
      %v670 = vmax.f32 %v635, 0.0
      %v671 = vmax.f32 %v638, 0.0
      %v672 = vld [vmem:[%s3] sm:$0xff]
      %v673 = vld [vmem:[%s3 + $0x8] sm:$0xff]
      %v674 = vld [vmem:[%s3 + $0x10] sm:$0xff]
      %v675 = vld [vmem:[%s3 + $0x18] sm:$0xff]
      %v676 = vld [vmem:[%s3 + $0x20] sm:$0xff]
      %v677 = vld [vmem:[%s3 + $0x28] sm:$0xff]
      %v678 = vld [vmem:[%s3 + $0x30] sm:$0xff]
      %v679 = vld [vmem:[%s3 + $0x38] sm:$0xff]
      %v680 = vld [vmem:[%s4] sm:$0x1]
      %v682 = vperm.slane %v680, 0
      %vm684 = vcmask 523264
      %v686 = vsel %vm684, %v640, 0
      %v689 = vsel %vm684, %v641, 0
      %v692 = vsel %vm684, %v642, 0
      %v695 = vsel %vm684, %v643, 0
      %v698 = vsel %vm684, %v644, 0
      %v701 = vsel %vm684, %v645, 0
      %v704 = vsel %vm684, %v646, 0
      %v707 = vsel %vm684, %v647, 0
      %v710 = vsel %vm684, %v648, 0
      %v713 = vsel %vm684, %v649, 0
      %v716 = vsel %vm684, %v650, 0
      %v719 = vsel %vm684, %v651, 0
      %v722 = vsel %vm684, %v652, 0
      %v725 = vsel %vm684, %v653, 0
      %v728 = vsel %vm684, %v654, 0
      %v731 = vsel %vm684, %v655, 0
      %v734 = vsel %vm684, %v656, 0
      %v737 = vsel %vm684, %v657, 0
      %v740 = vsel %vm684, %v658, 0
      %v743 = vsel %vm684, %v659, 0
      %v746 = vsel %vm684, %v660, 0
      %v749 = vsel %vm684, %v661, 0
      %v752 = vsel %vm684, %v662, 0
      %v755 = vsel %vm684, %v663, 0
      %v758 = vsel %vm684, %v664, 0
      %v761 = vsel %vm684, %v665, 0
      %v764 = vsel %vm684, %v666, 0
      %v767 = vsel %vm684, %v667, 0
      %v770 = vsel %vm684, %v668, 0
      %v773 = vsel %vm684, %v669, 0
      %v776 = vsel %vm684, %v670, 0
      %v779 = vsel %vm684, %v671, 0
      %781 = vmatpush.msra.mxu0 0.0
      %782 = vmatpush.msra.mxu0 0.0
      %783 = vmatpush.msra.mxu0 0.0
      %784 = vmatpush.msra.mxu0 0.0
      %785 = vmatpush.msra.mxu0 0.0
      %786 = vmatpush.msra.mxu0 0.0
      %787 = vmatpush.msra.mxu0 0.0
      %788 = vmatpush.msra.mxu0 0.0
      %789 = vmatpush.msra.mxu0 %v679
      %790 = vmatpush.msra.mxu0 %v678
      %791 = vmatpush.msra.mxu0 %v677
      %792 = vmatpush.msra.mxu0 %v676
      %793 = vmatpush.msra.mxu0 %v675
      %794 = vmatpush.msra.mxu0 %v674
      %795 = vmatpush.msra.mxu0 %v673
      %796 = vmatpush.msra.mxu0 %v672
      %797 = vmatmul.f32.gmra.mxu0 %v686
      %v798 = vpop.f32.mrf.mxu0
      %v799 = vadd.f32 %v682, %v798
      %800 = vmatmul.f32.gmra.mxu0 %v689
      %v801 = vpop.f32.mrf.mxu0
      %v802 = vadd.f32 %v682, %v801
      %803 = vmatmul.f32.gmra.mxu0 %v692
      %v804 = vpop.f32.mrf.mxu0
      %v805 = vadd.f32 %v682, %v804
      %806 = vmatmul.f32.gmra.mxu0 %v695
      %v807 = vpop.f32.mrf.mxu0
      %v808 = vadd.f32 %v682, %v807
      %809 = vmatmul.f32.gmra.mxu0 %v698
      %v810 = vpop.f32.mrf.mxu0
      %v811 = vadd.f32 %v682, %v810
      %812 = vmatmul.f32.gmra.mxu0 %v701
      %v813 = vpop.f32.mrf.mxu0
      %v814 = vadd.f32 %v682, %v813
      %815 = vmatmul.f32.gmra.mxu0 %v704
      %v816 = vpop.f32.mrf.mxu0
      %v817 = vadd.f32 %v682, %v816
      %818 = vmatmul.f32.gmra.mxu0 %v707
      %v819 = vpop.f32.mrf.mxu0
      %v820 = vadd.f32 %v682, %v819
      %821 = vmatmul.f32.gmra.mxu0 %v710
      %v822 = vpop.f32.mrf.mxu0
      %v823 = vadd.f32 %v682, %v822
      %824 = vmatmul.f32.gmra.mxu0 %v713
      %v825 = vpop.f32.mrf.mxu0
      %v826 = vadd.f32 %v682, %v825
      %827 = vmatmul.f32.gmra.mxu0 %v716
      %v828 = vpop.f32.mrf.mxu0
      %v829 = vadd.f32 %v682, %v828
      %830 = vmatmul.f32.gmra.mxu0 %v719
      %v831 = vpop.f32.mrf.mxu0
      %v832 = vadd.f32 %v682, %v831
      %833 = vmatmul.f32.gmra.mxu0 %v722
      %v834 = vpop.f32.mrf.mxu0
      %v835 = vadd.f32 %v682, %v834
      %836 = vmatmul.f32.gmra.mxu0 %v725
      %v837 = vpop.f32.mrf.mxu0
      %v838 = vadd.f32 %v682, %v837
      %839 = vmatmul.f32.gmra.mxu0 %v728
      %v840 = vpop.f32.mrf.mxu0
      %v841 = vadd.f32 %v682, %v840
      %842 = vmatmul.f32.gmra.mxu0 %v731
      %v843 = vpop.f32.mrf.mxu0
      %v844 = vadd.f32 %v682, %v843
      %845 = vmatmul.f32.gmra.mxu0 %v734
      %v846 = vpop.f32.mrf.mxu0
      %v847 = vadd.f32 %v682, %v846
      %848 = vmatmul.f32.gmra.mxu0 %v737
      %v849 = vpop.f32.mrf.mxu0
      %v850 = vadd.f32 %v682, %v849
      %851 = vmatmul.f32.gmra.mxu0 %v740
      %v852 = vpop.f32.mrf.mxu0
      %v853 = vadd.f32 %v682, %v852
      %854 = vmatmul.f32.gmra.mxu0 %v743
      %v855 = vpop.f32.mrf.mxu0
      %v856 = vadd.f32 %v682, %v855
      %857 = vmatmul.f32.gmra.mxu0 %v746
      %v858 = vpop.f32.mrf.mxu0
      %v859 = vadd.f32 %v682, %v858
      %860 = vmatmul.f32.gmra.mxu0 %v749
      %v861 = vpop.f32.mrf.mxu0
      %v862 = vadd.f32 %v682, %v861
      %863 = vmatmul.f32.gmra.mxu0 %v752
      %v864 = vpop.f32.mrf.mxu0
      %v865 = vadd.f32 %v682, %v864
      %866 = vmatmul.f32.gmra.mxu0 %v755
      %v867 = vpop.f32.mrf.mxu0
      %v868 = vadd.f32 %v682, %v867
      %869 = vmatmul.f32.gmra.mxu0 %v758
      %v870 = vpop.f32.mrf.mxu0
      %v871 = vadd.f32 %v682, %v870
      %872 = vmatmul.f32.gmra.mxu0 %v761
      %v873 = vpop.f32.mrf.mxu0
      %v874 = vadd.f32 %v682, %v873
      %875 = vmatmul.f32.gmra.mxu0 %v764
      %v876 = vpop.f32.mrf.mxu0
      %v877 = vadd.f32 %v682, %v876
      %878 = vmatmul.f32.gmra.mxu0 %v767
      %v879 = vpop.f32.mrf.mxu0
      %v880 = vadd.f32 %v682, %v879
      %881 = vmatmul.f32.gmra.mxu0 %v770
      %v882 = vpop.f32.mrf.mxu0
      %v883 = vadd.f32 %v682, %v882
      %884 = vmatmul.f32.gmra.mxu0 %v773
      %v885 = vpop.f32.mrf.mxu0
      %v886 = vadd.f32 %v682, %v885
      %887 = vmatmul.f32.gmra.mxu0 %v776
      %v888 = vpop.f32.mrf.mxu0
      %v889 = vadd.f32 %v682, %v888
      %890 = vmatmul.f32.gmra.mxu0 %v779
      %v891 = vpop.f32.mrf.mxu0
      %v892 = vadd.f32 %v682, %v891
      %893 = vdwg.mxu0
      %v894 = vmax.f32 %v799, 0.0
      %v895 = vmax.f32 %v802, 0.0
      %v896 = vmax.f32 %v805, 0.0
      %v897 = vmax.f32 %v808, 0.0
      %v898 = vmax.f32 %v811, 0.0
      %v899 = vmax.f32 %v814, 0.0
      %v900 = vmax.f32 %v817, 0.0
      %v901 = vmax.f32 %v820, 0.0
      %v902 = vmax.f32 %v823, 0.0
      %v903 = vmax.f32 %v826, 0.0
      %v904 = vmax.f32 %v829, 0.0
      %v905 = vmax.f32 %v832, 0.0
      %v906 = vmax.f32 %v835, 0.0
      %v907 = vmax.f32 %v838, 0.0
      %v908 = vmax.f32 %v841, 0.0
      %v909 = vmax.f32 %v844, 0.0
      %v910 = vmax.f32 %v847, 0.0
      %v911 = vmax.f32 %v850, 0.0
      %v912 = vmax.f32 %v853, 0.0
      %v913 = vmax.f32 %v856, 0.0
      %v914 = vmax.f32 %v859, 0.0
      %v915 = vmax.f32 %v862, 0.0
      %v916 = vmax.f32 %v865, 0.0
      %v917 = vmax.f32 %v868, 0.0
      %v918 = vmax.f32 %v871, 0.0
      %v919 = vmax.f32 %v874, 0.0
      %v920 = vmax.f32 %v877, 0.0
      %v921 = vmax.f32 %v880, 0.0
      %v922 = vmax.f32 %v883, 0.0
      %v923 = vmax.f32 %v886, 0.0
      %v924 = vmax.f32 %v889, 0.0
      %v925 = vmax.f32 %v892, 0.0
      %v926 = vld [vmem:[%s5] sm:$0xff]
      %v927 = vld [vmem:[%s5 + $0x8] sm:$0xff]
      %v928 = vld [vmem:[%s6] sm:$0x1]
      %v930 = vperm.slane %v928, 0
      %vm932 = vcmask 130048
      %v934 = vsel %vm932, %v894, 0
      %v937 = vsel %vm932, %v895, 0
      %v940 = vsel %vm932, %v896, 0
      %v943 = vsel %vm932, %v897, 0
      %v946 = vsel %vm932, %v898, 0
      %v949 = vsel %vm932, %v899, 0
      %v952 = vsel %vm932, %v900, 0
      %v955 = vsel %vm932, %v901, 0
      %v958 = vsel %vm932, %v902, 0
      %v961 = vsel %vm932, %v903, 0
      %v964 = vsel %vm932, %v904, 0
      %v967 = vsel %vm932, %v905, 0
      %v970 = vsel %vm932, %v906, 0
      %v973 = vsel %vm932, %v907, 0
      %v976 = vsel %vm932, %v908, 0
      %v979 = vsel %vm932, %v909, 0
      %v982 = vsel %vm932, %v910, 0
      %v985 = vsel %vm932, %v911, 0
      %v988 = vsel %vm932, %v912, 0
      %v991 = vsel %vm932, %v913, 0
      %v994 = vsel %vm932, %v914, 0
      %v997 = vsel %vm932, %v915, 0
      %v1000 = vsel %vm932, %v916, 0
      %v1003 = vsel %vm932, %v917, 0
      %v1006 = vsel %vm932, %v918, 0
      %v1009 = vsel %vm932, %v919, 0
      %v1012 = vsel %vm932, %v920, 0
      %v1015 = vsel %vm932, %v921, 0
      %v1018 = vsel %vm932, %v922, 0
      %v1021 = vsel %vm932, %v923, 0
      %v1024 = vsel %vm932, %v924, 0
      %v1027 = vsel %vm932, %v925, 0
      %1029 = vmatpush.msra.mxu0 0.0
      %1030 = vmatpush.msra.mxu0 0.0
      %1031 = vmatpush.msra.mxu0 0.0
      %1032 = vmatpush.msra.mxu0 0.0
      %1033 = vmatpush.msra.mxu0 0.0
      %1034 = vmatpush.msra.mxu0 0.0
      %1035 = vmatpush.msra.mxu0 0.0
      %1036 = vmatpush.msra.mxu0 0.0
      %1037 = vmatpush.msra.mxu0 0.0
      %1038 = vmatpush.msra.mxu0 0.0
      %1039 = vmatpush.msra.mxu0 0.0
      %1040 = vmatpush.msra.mxu0 0.0
      %1041 = vmatpush.msra.mxu0 0.0
      %1042 = vmatpush.msra.mxu0 0.0
      %1043 = vmatpush.msra.mxu0 %v927
      %1044 = vmatpush.msra.mxu0 %v926
      %1045 = vmatmul.f32.gmra.mxu0 %v934
      %v1046 = vpop.f32.mrf.mxu0
      %v1047 = vadd.f32 %v930, %v1046
      %1048 = vmatmul.f32.gmra.mxu0 %v937
      %v1049 = vpop.f32.mrf.mxu0
      %v1050 = vadd.f32 %v930, %v1049
      %1051 = vmatmul.f32.gmra.mxu0 %v940
      %v1052 = vpop.f32.mrf.mxu0
      %v1053 = vadd.f32 %v930, %v1052
      %1054 = vmatmul.f32.gmra.mxu0 %v943
      %v1055 = vpop.f32.mrf.mxu0
      %v1056 = vadd.f32 %v930, %v1055
      %1057 = vmatmul.f32.gmra.mxu0 %v946
      %v1058 = vpop.f32.mrf.mxu0
      %v1059 = vadd.f32 %v930, %v1058
      %1060 = vmatmul.f32.gmra.mxu0 %v949
      %v1061 = vpop.f32.mrf.mxu0
      %v1062 = vadd.f32 %v930, %v1061
      %1063 = vmatmul.f32.gmra.mxu0 %v952
      %v1064 = vpop.f32.mrf.mxu0
      %v1065 = vadd.f32 %v930, %v1064
      %1066 = vmatmul.f32.gmra.mxu0 %v955
      %v1067 = vpop.f32.mrf.mxu0
      %v1068 = vadd.f32 %v930, %v1067
      %1069 = vmatmul.f32.gmra.mxu0 %v958
      %v1070 = vpop.f32.mrf.mxu0
      %v1071 = vadd.f32 %v930, %v1070
      %1072 = vmatmul.f32.gmra.mxu0 %v961
      %v1073 = vpop.f32.mrf.mxu0
      %v1074 = vadd.f32 %v930, %v1073
      %1075 = vmatmul.f32.gmra.mxu0 %v964
      %v1076 = vpop.f32.mrf.mxu0
      %v1077 = vadd.f32 %v930, %v1076
      %1078 = vmatmul.f32.gmra.mxu0 %v967
      %v1079 = vpop.f32.mrf.mxu0
      %v1080 = vadd.f32 %v930, %v1079
      %1081 = vmatmul.f32.gmra.mxu0 %v970
      %v1082 = vpop.f32.mrf.mxu0
      %v1083 = vadd.f32 %v930, %v1082
      %1084 = vmatmul.f32.gmra.mxu0 %v973
      %v1085 = vpop.f32.mrf.mxu0
      %v1086 = vadd.f32 %v930, %v1085
      %1087 = vmatmul.f32.gmra.mxu0 %v976
      %v1088 = vpop.f32.mrf.mxu0
      %v1089 = vadd.f32 %v930, %v1088
      %1090 = vmatmul.f32.gmra.mxu0 %v979
      %v1091 = vpop.f32.mrf.mxu0
      %v1092 = vadd.f32 %v930, %v1091
      %1093 = vmatmul.f32.gmra.mxu0 %v982
      %v1094 = vpop.f32.mrf.mxu0
      %v1095 = vadd.f32 %v930, %v1094
      %1096 = vmatmul.f32.gmra.mxu0 %v985
      %v1097 = vpop.f32.mrf.mxu0
      %v1098 = vadd.f32 %v930, %v1097
      %1099 = vmatmul.f32.gmra.mxu0 %v988
      %v1100 = vpop.f32.mrf.mxu0
      %v1101 = vadd.f32 %v930, %v1100
      %1102 = vmatmul.f32.gmra.mxu0 %v991
      %v1103 = vpop.f32.mrf.mxu0
      %v1104 = vadd.f32 %v930, %v1103
      %1105 = vmatmul.f32.gmra.mxu0 %v994
      %v1106 = vpop.f32.mrf.mxu0
      %v1107 = vadd.f32 %v930, %v1106
      %1108 = vmatmul.f32.gmra.mxu0 %v997
      %v1109 = vpop.f32.mrf.mxu0
      %v1110 = vadd.f32 %v930, %v1109
      %1111 = vmatmul.f32.gmra.mxu0 %v1000
      %v1112 = vpop.f32.mrf.mxu0
      %v1113 = vadd.f32 %v930, %v1112
      %1114 = vmatmul.f32.gmra.mxu0 %v1003
      %v1115 = vpop.f32.mrf.mxu0
      %v1116 = vadd.f32 %v930, %v1115
      %1117 = vmatmul.f32.gmra.mxu0 %v1006
      %v1118 = vpop.f32.mrf.mxu0
      %v1119 = vadd.f32 %v930, %v1118
      %1120 = vmatmul.f32.gmra.mxu0 %v1009
      %v1121 = vpop.f32.mrf.mxu0
      %v1122 = vadd.f32 %v930, %v1121
      %1123 = vmatmul.f32.gmra.mxu0 %v1012
      %v1124 = vpop.f32.mrf.mxu0
      %v1125 = vadd.f32 %v930, %v1124
      %1126 = vmatmul.f32.gmra.mxu0 %v1015
      %v1127 = vpop.f32.mrf.mxu0
      %v1128 = vadd.f32 %v930, %v1127
      %1129 = vmatmul.f32.gmra.mxu0 %v1018
      %v1130 = vpop.f32.mrf.mxu0
      %v1131 = vadd.f32 %v930, %v1130
      %1132 = vmatmul.f32.gmra.mxu0 %v1021
      %v1133 = vpop.f32.mrf.mxu0
      %v1134 = vadd.f32 %v930, %v1133
      %1135 = vmatmul.f32.gmra.mxu0 %v1024
      %v1136 = vpop.f32.mrf.mxu0
      %v1137 = vadd.f32 %v930, %v1136
      %1138 = vmatmul.f32.gmra.mxu0 %v1027
      %v1139 = vpop.f32.mrf.mxu0
      %v1140 = vadd.f32 %v930, %v1139
      %1141 = vdwg.mxu0
      %v1142 = vmax.f32 %v1047, 0.0
      %v1143 = vmax.f32 %v1050, 0.0
      %v1144 = vmax.f32 %v1053, 0.0
      %v1145 = vmax.f32 %v1056, 0.0
      %v1146 = vmax.f32 %v1059, 0.0
      %v1147 = vmax.f32 %v1062, 0.0
      %v1148 = vmax.f32 %v1065, 0.0
      %v1149 = vmax.f32 %v1068, 0.0
      %v1150 = vmax.f32 %v1071, 0.0
      %v1151 = vmax.f32 %v1074, 0.0
      %v1152 = vmax.f32 %v1077, 0.0
      %v1153 = vmax.f32 %v1080, 0.0
      %v1154 = vmax.f32 %v1083, 0.0
      %v1155 = vmax.f32 %v1086, 0.0
      %v1156 = vmax.f32 %v1089, 0.0
      %v1157 = vmax.f32 %v1092, 0.0
      %v1158 = vmax.f32 %v1095, 0.0
      %v1159 = vmax.f32 %v1098, 0.0
      %v1160 = vmax.f32 %v1101, 0.0
      %v1161 = vmax.f32 %v1104, 0.0
      %v1162 = vmax.f32 %v1107, 0.0
      %v1163 = vmax.f32 %v1110, 0.0
      %v1164 = vmax.f32 %v1113, 0.0
      %v1165 = vmax.f32 %v1116, 0.0
      %v1166 = vmax.f32 %v1119, 0.0
      %v1167 = vmax.f32 %v1122, 0.0
      %v1168 = vmax.f32 %v1125, 0.0
      %v1169 = vmax.f32 %v1128, 0.0
      %v1170 = vmax.f32 %v1131, 0.0
      %v1171 = vmax.f32 %v1134, 0.0
      %v1172 = vmax.f32 %v1137, 0.0
      %v1173 = vmax.f32 %v1140, 0.0
      %v1174 = vld [vmem:[%s7] sm:$0xff]
      %v1175 = vld [vmem:[%s7 + $0x8] sm:$0xff]
      %v1176 = vld [vmem:[%s8] sm:$0x1]
      %v1178 = vperm.slane %v1176, 0
      %v1181 = vsel %vm932, %v1142, 0
      %v1184 = vsel %vm932, %v1143, 0
      %v1187 = vsel %vm932, %v1144, 0
      %v1190 = vsel %vm932, %v1145, 0
      %v1193 = vsel %vm932, %v1146, 0
      %v1196 = vsel %vm932, %v1147, 0
      %v1199 = vsel %vm932, %v1148, 0
      %v1202 = vsel %vm932, %v1149, 0
      %v1205 = vsel %vm932, %v1150, 0
      %v1208 = vsel %vm932, %v1151, 0
      %v1211 = vsel %vm932, %v1152, 0
      %v1214 = vsel %vm932, %v1153, 0
      %v1217 = vsel %vm932, %v1154, 0
      %v1220 = vsel %vm932, %v1155, 0
      %v1223 = vsel %vm932, %v1156, 0
      %v1226 = vsel %vm932, %v1157, 0
      %v1229 = vsel %vm932, %v1158, 0
      %v1232 = vsel %vm932, %v1159, 0
      %v1235 = vsel %vm932, %v1160, 0
      %v1238 = vsel %vm932, %v1161, 0
      %v1241 = vsel %vm932, %v1162, 0
      %v1244 = vsel %vm932, %v1163, 0
      %v1247 = vsel %vm932, %v1164, 0
      %v1250 = vsel %vm932, %v1165, 0
      %v1253 = vsel %vm932, %v1166, 0
      %v1256 = vsel %vm932, %v1167, 0
      %v1259 = vsel %vm932, %v1168, 0
      %v1262 = vsel %vm932, %v1169, 0
      %v1265 = vsel %vm932, %v1170, 0
      %v1268 = vsel %vm932, %v1171, 0
      %v1271 = vsel %vm932, %v1172, 0
      %v1274 = vsel %vm932, %v1173, 0
      %1276 = vmatpush.msra.mxu0 0.0
      %1277 = vmatpush.msra.mxu0 0.0
      %1278 = vmatpush.msra.mxu0 0.0
      %1279 = vmatpush.msra.mxu0 0.0
      %1280 = vmatpush.msra.mxu0 0.0
      %1281 = vmatpush.msra.mxu0 0.0
      %1282 = vmatpush.msra.mxu0 0.0
      %1283 = vmatpush.msra.mxu0 0.0
      %1284 = vmatpush.msra.mxu0 0.0
      %1285 = vmatpush.msra.mxu0 0.0
      %1286 = vmatpush.msra.mxu0 0.0
      %1287 = vmatpush.msra.mxu0 0.0
      %1288 = vmatpush.msra.mxu0 0.0
      %1289 = vmatpush.msra.mxu0 0.0
      %1290 = vmatpush.msra.mxu0 %v1175
      %1291 = vmatpush.msra.mxu0 %v1174
      %1292 = vmatmul.f32.gmra.mxu0 %v1181
      %v1293 = vpop.f32.mrf.mxu0
      %v1294 = vadd.f32 %v1178, %v1293
      %1295 = vmatmul.f32.gmra.mxu0 %v1184
      %v1296 = vpop.f32.mrf.mxu0
      %v1297 = vadd.f32 %v1178, %v1296
      %1298 = vmatmul.f32.gmra.mxu0 %v1187
      %v1299 = vpop.f32.mrf.mxu0
      %v1300 = vadd.f32 %v1178, %v1299
      %1301 = vmatmul.f32.gmra.mxu0 %v1190
      %v1302 = vpop.f32.mrf.mxu0
      %v1303 = vadd.f32 %v1178, %v1302
      %1304 = vmatmul.f32.gmra.mxu0 %v1193
      %v1305 = vpop.f32.mrf.mxu0
      %v1306 = vadd.f32 %v1178, %v1305
      %1307 = vmatmul.f32.gmra.mxu0 %v1196
      %v1308 = vpop.f32.mrf.mxu0
      %v1309 = vadd.f32 %v1178, %v1308
      %1310 = vmatmul.f32.gmra.mxu0 %v1199
      %v1311 = vpop.f32.mrf.mxu0
      %v1312 = vadd.f32 %v1178, %v1311
      %1313 = vmatmul.f32.gmra.mxu0 %v1202
      %v1314 = vpop.f32.mrf.mxu0
      %v1315 = vadd.f32 %v1178, %v1314
      %1316 = vmatmul.f32.gmra.mxu0 %v1205
      %v1317 = vpop.f32.mrf.mxu0
      %v1318 = vadd.f32 %v1178, %v1317
      %1319 = vmatmul.f32.gmra.mxu0 %v1208
      %v1320 = vpop.f32.mrf.mxu0
      %v1321 = vadd.f32 %v1178, %v1320
      %1322 = vmatmul.f32.gmra.mxu0 %v1211
      %v1323 = vpop.f32.mrf.mxu0
      %v1324 = vadd.f32 %v1178, %v1323
      %1325 = vmatmul.f32.gmra.mxu0 %v1214
      %v1326 = vpop.f32.mrf.mxu0
      %v1327 = vadd.f32 %v1178, %v1326
      %1328 = vmatmul.f32.gmra.mxu0 %v1217
      %v1329 = vpop.f32.mrf.mxu0
      %v1330 = vadd.f32 %v1178, %v1329
      %1331 = vmatmul.f32.gmra.mxu0 %v1220
      %v1332 = vpop.f32.mrf.mxu0
      %v1333 = vadd.f32 %v1178, %v1332
      %1334 = vmatmul.f32.gmra.mxu0 %v1223
      %v1335 = vpop.f32.mrf.mxu0
      %v1336 = vadd.f32 %v1178, %v1335
      %1337 = vmatmul.f32.gmra.mxu0 %v1226
      %v1338 = vpop.f32.mrf.mxu0
      %v1339 = vadd.f32 %v1178, %v1338
      %1340 = vmatmul.f32.gmra.mxu0 %v1229
      %v1341 = vpop.f32.mrf.mxu0
      %v1342 = vadd.f32 %v1178, %v1341
      %1343 = vmatmul.f32.gmra.mxu0 %v1232
      %v1344 = vpop.f32.mrf.mxu0
      %v1345 = vadd.f32 %v1178, %v1344
      %1346 = vmatmul.f32.gmra.mxu0 %v1235
      %v1347 = vpop.f32.mrf.mxu0
      %v1348 = vadd.f32 %v1178, %v1347
      %1349 = vmatmul.f32.gmra.mxu0 %v1238
      %v1350 = vpop.f32.mrf.mxu0
      %v1351 = vadd.f32 %v1178, %v1350
      %1352 = vmatmul.f32.gmra.mxu0 %v1241
      %v1353 = vpop.f32.mrf.mxu0
      %v1354 = vadd.f32 %v1178, %v1353
      %1355 = vmatmul.f32.gmra.mxu0 %v1244
      %v1356 = vpop.f32.mrf.mxu0
      %v1357 = vadd.f32 %v1178, %v1356
      %1358 = vmatmul.f32.gmra.mxu0 %v1247
      %v1359 = vpop.f32.mrf.mxu0
      %v1360 = vadd.f32 %v1178, %v1359
      %1361 = vmatmul.f32.gmra.mxu0 %v1250
      %v1362 = vpop.f32.mrf.mxu0
      %v1363 = vadd.f32 %v1178, %v1362
      %1364 = vmatmul.f32.gmra.mxu0 %v1253
      %v1365 = vpop.f32.mrf.mxu0
      %v1366 = vadd.f32 %v1178, %v1365
      %1367 = vmatmul.f32.gmra.mxu0 %v1256
      %v1368 = vpop.f32.mrf.mxu0
      %v1369 = vadd.f32 %v1178, %v1368
      %1370 = vmatmul.f32.gmra.mxu0 %v1259
      %v1371 = vpop.f32.mrf.mxu0
      %v1372 = vadd.f32 %v1178, %v1371
      %1373 = vmatmul.f32.gmra.mxu0 %v1262
      %v1374 = vpop.f32.mrf.mxu0
      %v1375 = vadd.f32 %v1178, %v1374
      %1376 = vmatmul.f32.gmra.mxu0 %v1265
      %v1377 = vpop.f32.mrf.mxu0
      %v1378 = vadd.f32 %v1178, %v1377
      %1379 = vmatmul.f32.gmra.mxu0 %v1268
      %v1380 = vpop.f32.mrf.mxu0
      %v1381 = vadd.f32 %v1178, %v1380
      %1382 = vmatmul.f32.gmra.mxu0 %v1271
      %v1383 = vpop.f32.mrf.mxu0
      %v1384 = vadd.f32 %v1178, %v1383
      %1385 = vmatmul.f32.gmra.mxu0 %v1274
      %v1386 = vpop.f32.mrf.mxu0
      %v1387 = vadd.f32 %v1178, %v1386
      %1388 = vdwg.mxu0
      %v1389 = vmax.f32 %v1294, 0.0
      %v1390 = vmax.f32 %v1297, 0.0
      %v1391 = vmax.f32 %v1300, 0.0
      %v1392 = vmax.f32 %v1303, 0.0
      %v1393 = vmax.f32 %v1306, 0.0
      %v1394 = vmax.f32 %v1309, 0.0
      %v1395 = vmax.f32 %v1312, 0.0
      %v1396 = vmax.f32 %v1315, 0.0
      %v1397 = vmax.f32 %v1318, 0.0
      %v1398 = vmax.f32 %v1321, 0.0
      %v1399 = vmax.f32 %v1324, 0.0
      %v1400 = vmax.f32 %v1327, 0.0
      %v1401 = vmax.f32 %v1330, 0.0
      %v1402 = vmax.f32 %v1333, 0.0
      %v1403 = vmax.f32 %v1336, 0.0
      %v1404 = vmax.f32 %v1339, 0.0
      %v1405 = vmax.f32 %v1342, 0.0
      %v1406 = vmax.f32 %v1345, 0.0
      %v1407 = vmax.f32 %v1348, 0.0
      %v1408 = vmax.f32 %v1351, 0.0
      %v1409 = vmax.f32 %v1354, 0.0
      %v1410 = vmax.f32 %v1357, 0.0
      %v1411 = vmax.f32 %v1360, 0.0
      %v1412 = vmax.f32 %v1363, 0.0
      %v1413 = vmax.f32 %v1366, 0.0
      %v1414 = vmax.f32 %v1369, 0.0
      %v1415 = vmax.f32 %v1372, 0.0
      %v1416 = vmax.f32 %v1375, 0.0
      %v1417 = vmax.f32 %v1378, 0.0
      %v1418 = vmax.f32 %v1381, 0.0
      %v1419 = vmax.f32 %v1384, 0.0
      %v1420 = vmax.f32 %v1387, 0.0
      %v1421 = vld [vmem:[%s9] sm:$0xff]
      %v1422 = vld [vmem:[%s9 + $0x8] sm:$0xff]
      %v1423 = vld [vmem:[%s9 + $0x10] sm:$0xff]
      %v1424 = vld [vmem:[%s9 + $0x18] sm:$0xff]
      %v1425 = vld [vmem:[%s9 + $0x20] sm:$0xff]
      %v1426 = vld [vmem:[%s9 + $0x28] sm:$0xff]
      %v1427 = vld [vmem:[%s9 + $0x30] sm:$0xff]
      %v1428 = vld [vmem:[%s9 + $0x38] sm:$0xff]
      %v1429 = vld [vmem:[%s10] sm:$0x1]
      %v1431 = vperm.slane %v1429, 0
      %v1434 = vsel %vm684, %v1389, 0
      %v1437 = vsel %vm684, %v1390, 0
      %v1440 = vsel %vm684, %v1391, 0
      %v1443 = vsel %vm684, %v1392, 0
      %v1446 = vsel %vm684, %v1393, 0
      %v1449 = vsel %vm684, %v1394, 0
      %v1452 = vsel %vm684, %v1395, 0
      %v1455 = vsel %vm684, %v1396, 0
      %v1458 = vsel %vm684, %v1397, 0
      %v1461 = vsel %vm684, %v1398, 0
      %v1464 = vsel %vm684, %v1399, 0
      %v1467 = vsel %vm684, %v1400, 0
      %v1470 = vsel %vm684, %v1401, 0
      %v1473 = vsel %vm684, %v1402, 0
      %v1476 = vsel %vm684, %v1403, 0
      %v1479 = vsel %vm684, %v1404, 0
      %v1482 = vsel %vm684, %v1405, 0
      %v1485 = vsel %vm684, %v1406, 0
      %v1488 = vsel %vm684, %v1407, 0
      %v1491 = vsel %vm684, %v1408, 0
      %v1494 = vsel %vm684, %v1409, 0
      %v1497 = vsel %vm684, %v1410, 0
      %v1500 = vsel %vm684, %v1411, 0
      %v1503 = vsel %vm684, %v1412, 0
      %v1506 = vsel %vm684, %v1413, 0
      %v1509 = vsel %vm684, %v1414, 0
      %v1512 = vsel %vm684, %v1415, 0
      %v1515 = vsel %vm684, %v1416, 0
      %v1518 = vsel %vm684, %v1417, 0
      %v1521 = vsel %vm684, %v1418, 0
      %v1524 = vsel %vm684, %v1419, 0
      %v1527 = vsel %vm684, %v1420, 0
      %1529 = vmatpush.msra.mxu0 0.0
      %1530 = vmatpush.msra.mxu0 0.0
      %1531 = vmatpush.msra.mxu0 0.0
      %1532 = vmatpush.msra.mxu0 0.0
      %1533 = vmatpush.msra.mxu0 0.0
      %1534 = vmatpush.msra.mxu0 0.0
      %1535 = vmatpush.msra.mxu0 0.0
      %1536 = vmatpush.msra.mxu0 0.0
      %1537 = vmatpush.msra.mxu0 %v1428
      %1538 = vmatpush.msra.mxu0 %v1427
      %1539 = vmatpush.msra.mxu0 %v1426
      %1540 = vmatpush.msra.mxu0 %v1425
      %1541 = vmatpush.msra.mxu0 %v1424
      %1542 = vmatpush.msra.mxu0 %v1423
      %1543 = vmatpush.msra.mxu0 %v1422
      %1544 = vmatpush.msra.mxu0 %v1421
      %1545 = vmatmul.f32.gmra.mxu0 %v1434
      %v1546 = vpop.f32.mrf.mxu0
      %v1547 = vadd.f32 %v1431, %v1546
      %1548 = vmatmul.f32.gmra.mxu0 %v1437
      %v1549 = vpop.f32.mrf.mxu0
      %v1550 = vadd.f32 %v1431, %v1549
      %1551 = vmatmul.f32.gmra.mxu0 %v1440
      %v1552 = vpop.f32.mrf.mxu0
      %v1553 = vadd.f32 %v1431, %v1552
      %1554 = vmatmul.f32.gmra.mxu0 %v1443
      %v1555 = vpop.f32.mrf.mxu0
      %v1556 = vadd.f32 %v1431, %v1555
      %1557 = vmatmul.f32.gmra.mxu0 %v1446
      %v1558 = vpop.f32.mrf.mxu0
      %v1559 = vadd.f32 %v1431, %v1558
      %1560 = vmatmul.f32.gmra.mxu0 %v1449
      %v1561 = vpop.f32.mrf.mxu0
      %v1562 = vadd.f32 %v1431, %v1561
      %1563 = vmatmul.f32.gmra.mxu0 %v1452
      %v1564 = vpop.f32.mrf.mxu0
      %v1565 = vadd.f32 %v1431, %v1564
      %1566 = vmatmul.f32.gmra.mxu0 %v1455
      %v1567 = vpop.f32.mrf.mxu0
      %v1568 = vadd.f32 %v1431, %v1567
      %1569 = vmatmul.f32.gmra.mxu0 %v1458
      %v1570 = vpop.f32.mrf.mxu0
      %v1571 = vadd.f32 %v1431, %v1570
      %1572 = vmatmul.f32.gmra.mxu0 %v1461
      %v1573 = vpop.f32.mrf.mxu0
      %v1574 = vadd.f32 %v1431, %v1573
      %1575 = vmatmul.f32.gmra.mxu0 %v1464
      %v1576 = vpop.f32.mrf.mxu0
      %v1577 = vadd.f32 %v1431, %v1576
      %1578 = vmatmul.f32.gmra.mxu0 %v1467
      %v1579 = vpop.f32.mrf.mxu0
      %v1580 = vadd.f32 %v1431, %v1579
      %1581 = vmatmul.f32.gmra.mxu0 %v1470
      %v1582 = vpop.f32.mrf.mxu0
      %v1583 = vadd.f32 %v1431, %v1582
      %1584 = vmatmul.f32.gmra.mxu0 %v1473
      %v1585 = vpop.f32.mrf.mxu0
      %v1586 = vadd.f32 %v1431, %v1585
      %1587 = vmatmul.f32.gmra.mxu0 %v1476
      %v1588 = vpop.f32.mrf.mxu0
      %v1589 = vadd.f32 %v1431, %v1588
      %1590 = vmatmul.f32.gmra.mxu0 %v1479
      %v1591 = vpop.f32.mrf.mxu0
      %v1592 = vadd.f32 %v1431, %v1591
      %1593 = vmatmul.f32.gmra.mxu0 %v1482
      %v1594 = vpop.f32.mrf.mxu0
      %v1595 = vadd.f32 %v1431, %v1594
      %1596 = vmatmul.f32.gmra.mxu0 %v1485
      %v1597 = vpop.f32.mrf.mxu0
      %v1598 = vadd.f32 %v1431, %v1597
      %1599 = vmatmul.f32.gmra.mxu0 %v1488
      %v1600 = vpop.f32.mrf.mxu0
      %v1601 = vadd.f32 %v1431, %v1600
      %1602 = vmatmul.f32.gmra.mxu0 %v1491
      %v1603 = vpop.f32.mrf.mxu0
      %v1604 = vadd.f32 %v1431, %v1603
      %1605 = vmatmul.f32.gmra.mxu0 %v1494
      %v1606 = vpop.f32.mrf.mxu0
      %v1607 = vadd.f32 %v1431, %v1606
      %1608 = vmatmul.f32.gmra.mxu0 %v1497
      %v1609 = vpop.f32.mrf.mxu0
      %v1610 = vadd.f32 %v1431, %v1609
      %1611 = vmatmul.f32.gmra.mxu0 %v1500
      %v1612 = vpop.f32.mrf.mxu0
      %v1613 = vadd.f32 %v1431, %v1612
      %1614 = vmatmul.f32.gmra.mxu0 %v1503
      %v1615 = vpop.f32.mrf.mxu0
      %v1616 = vadd.f32 %v1431, %v1615
      %1617 = vmatmul.f32.gmra.mxu0 %v1506
      %v1618 = vpop.f32.mrf.mxu0
      %v1619 = vadd.f32 %v1431, %v1618
      %1620 = vmatmul.f32.gmra.mxu0 %v1509
      %v1621 = vpop.f32.mrf.mxu0
      %v1622 = vadd.f32 %v1431, %v1621
      %1623 = vmatmul.f32.gmra.mxu0 %v1512
      %v1624 = vpop.f32.mrf.mxu0
      %v1625 = vadd.f32 %v1431, %v1624
      %1626 = vmatmul.f32.gmra.mxu0 %v1515
      %v1627 = vpop.f32.mrf.mxu0
      %v1628 = vadd.f32 %v1431, %v1627
      %1629 = vmatmul.f32.gmra.mxu0 %v1518
      %v1630 = vpop.f32.mrf.mxu0
      %v1631 = vadd.f32 %v1431, %v1630
      %1632 = vmatmul.f32.gmra.mxu0 %v1521
      %v1633 = vpop.f32.mrf.mxu0
      %v1634 = vadd.f32 %v1431, %v1633
      %1635 = vmatmul.f32.gmra.mxu0 %v1524
      %v1636 = vpop.f32.mrf.mxu0
      %v1637 = vadd.f32 %v1431, %v1636
      %1638 = vmatmul.f32.gmra.mxu0 %v1527
      %v1639 = vpop.f32.mrf.mxu0
      %v1640 = vadd.f32 %v1431, %v1639
      %1641 = vdwg.mxu0
      %1642 = vst.msk [vmem:[%s388] sm:$0xff] %vm430, %v1547
      %1643 = vst.msk [vmem:[%s388 + $0x8] sm:$0xff] %vm430, %v1550
      %1644 = vst.msk [vmem:[%s388 + $0x10] sm:$0xff] %vm430, %v1553
      %1645 = vst.msk [vmem:[%s388 + $0x18] sm:$0xff] %vm430, %v1556
      %1646 = vst.msk [vmem:[%s388 + $0x20] sm:$0xff] %vm430, %v1559
      %1647 = vst.msk [vmem:[%s388 + $0x28] sm:$0xff] %vm430, %v1562
      %1648 = vst.msk [vmem:[%s388 + $0x30] sm:$0xff] %vm430, %v1565
      %1649 = vst.msk [vmem:[%s388 + $0x38] sm:$0xff] %vm430, %v1568
      %1650 = vst.msk [vmem:[%s388 + $0x40] sm:$0xff] %vm430, %v1571
      %1651 = vst.msk [vmem:[%s388 + $0x48] sm:$0xff] %vm430, %v1574
      %1652 = vst.msk [vmem:[%s388 + $0x50] sm:$0xff] %vm430, %v1577
      %1653 = vst.msk [vmem:[%s388 + $0x58] sm:$0xff] %vm430, %v1580
      %1654 = vst.msk [vmem:[%s388 + $0x60] sm:$0xff] %vm430, %v1583
      %1655 = vst.msk [vmem:[%s388 + $0x68] sm:$0xff] %vm430, %v1586
      %1656 = vst.msk [vmem:[%s388 + $0x70] sm:$0xff] %vm430, %v1589
      %1657 = vst.msk [vmem:[%s388 + $0x78] sm:$0xff] %vm430, %v1592
      %1658 = vst.msk [vmem:[%s388 + $0x80] sm:$0xff] %vm430, %v1595
      %1659 = vst.msk [vmem:[%s388 + $0x88] sm:$0xff] %vm430, %v1598
      %1660 = vst.msk [vmem:[%s388 + $0x90] sm:$0xff] %vm430, %v1601
      %1661 = vst.msk [vmem:[%s388 + $0x98] sm:$0xff] %vm430, %v1604
      %1662 = vst.msk [vmem:[%s388 + $0xa0] sm:$0xff] %vm430, %v1607
      %1663 = vst.msk [vmem:[%s388 + $0xa8] sm:$0xff] %vm430, %v1610
      %1664 = vst.msk [vmem:[%s388 + $0xb0] sm:$0xff] %vm430, %v1613
      %1665 = vst.msk [vmem:[%s388 + $0xb8] sm:$0xff] %vm430, %v1616
      %1666 = vst.msk [vmem:[%s388 + $0xc0] sm:$0xff] %vm430, %v1619
      %1667 = vst.msk [vmem:[%s388 + $0xc8] sm:$0xff] %vm430, %v1622
      %1668 = vst.msk [vmem:[%s388 + $0xd0] sm:$0xff] %vm430, %v1625
      %1669 = vst.msk [vmem:[%s388 + $0xd8] sm:$0xff] %vm430, %v1628
      %1670 = vst.msk [vmem:[%s388 + $0xe0] sm:$0xff] %vm430, %v1631
      %1671 = vst.msk [vmem:[%s388 + $0xe8] sm:$0xff] %vm430, %v1634
      %1672 = vst.msk [vmem:[%s388 + $0xf0] sm:$0xff] %vm430, %v1637
      %1673 = vst.msk [vmem:[%s388 + $0xf8] sm:$0xff] %vm430, %v1640
      %s1674 = smul.u32 32, %s22
      %p1675 = scmp.lt.s32.totalorder %s1674, 127
      %s1676 = scalar_select %p1675, %s1674, 127
      %s1677 = smul.addr %s1676, 8
      %s1678 = scalar_lea.vmem %s11, %s1677
      // Predicated region
      $region65: #{autoencoder_forward.1} parent=63 // pred_check
        %p1679 = pneg %p276
      $region66: #{autoencoder_forward.1} parent=63 // pred_check_branch
        %1681 = sbr.rel (%p1679) target = $region68
      $region67: #{autoencoder_forward.1} parent=63 // pred_region
        %s1682 = smul.u32 32, %s22
      $region68: #{autoencoder_forward.1} parent=63 // pred_fallthru
        _
    $region64: #{autoencoder_forward.1} parent=5 // pred_fallthru
      _
    %p1683 = scmp.le.s32.totalorder 2, %s17
    // Predicated region
    $region69: #{autoencoder_forward.1} parent=5 // pred_check
      %p1684 = pneg %p1683
    $region70: #{autoencoder_forward.1} parent=5 // pred_check_branch
      %1686 = sbr.rel (%p1684) target = $region72
    $region71: #{autoencoder_forward.1} parent=5 // pred_region
      %s1687 = ssub.s32 %s17, 2
      // Predicated region
      $region73: #{autoencoder_forward.1} parent=71 // pred_check
        %p1688 = pneg %p282
      $region74: #{autoencoder_forward.1} parent=71 // pred_check_branch
        %1690 = sbr.rel (%p1688) target = $region76
      $region75: #{autoencoder_forward.1} parent=71 // pred_region
        %s1691 = smul.u32 32, %s23
        %p1692 = scmp.lt.s32.totalorder %s1691, 127
        %s1693 = scalar_select %p1692, %s1691, 127
        %s1694 = smul.addr %s1693, 8
        %s1695 = scalar_lea.vmem %s11, %s1694
      $region76: #{autoencoder_forward.1} parent=71 // pred_fallthru
        _
    $region72: #{autoencoder_forward.1} parent=5 // pred_fallthru
      _
  $region6: #{autoencoder_forward.1} parent=0 // loop_footer
    %s21 = sadd.s32 1, %s17
  $region7: #{autoencoder_forward.1} parent=0 // loop_footer_branch
    %16 = sbr.rel target = $region3
  $region8: #{autoencoder_forward.1} parent=0 // loop_exit
    _

</llo_original>
